<compile_context>
chip_gen: v6e
topology: v6e:2x2x1
jax: 0.10.0
libtpu: 0.0.40
codegen_flags: <defaults>
</compile_context>

<pallas_src>
import jax
import jax.numpy as jnp
from jax.experimental import pallas as pl
from jax.experimental.pallas import tpu as pltpu


def make_fused_lstm_kernel(num_layers, seq_len, hidden_size):
    """Builds kernel(x, [w_ih,w_hh,b]*L, h0, c0, w_fc, b_fc, out, h_scratch)."""
    T, H = seq_len, hidden_size

    def kernel(x_ref, *refs):
        layer_refs = refs[:3 * num_layers]
        (h0_ref, c0_ref, wfc_ref, bfc_ref,
         out_ref, hseq_sc) = refs[3 * num_layers:]

        # Gate-activation affine constants (hoisted once, outside the loops):
        # i/f/o lanes get 0.5*tanh + 0.5 (== sigmoid of the unscaled preact,
        # since those weight columns were halved on the host), g lanes get tanh.
        lane = jax.lax.broadcasted_iota(jnp.int32, (1, 4 * H), 1)
        is_g = jnp.logical_and(lane >= 2 * H, lane < 3 * H)
        act_scale = jnp.where(is_g, 1.0, 0.5).astype(jnp.float32)
        act_shift = jnp.where(is_g, 0.0, 0.5).astype(jnp.float32)

        # Weights resident as values for the whole sequence.
        w_ih = [layer_refs[3 * l][...] for l in range(num_layers)]      # (D,4H)
        w_hh = [layer_refs[3 * l + 1][...] for l in range(num_layers)]  # (H,4H)
        bias = [layer_refs[3 * l + 2][...] for l in range(num_layers)]  # (1,4H)

        # Layer-0 non-recurrent projection for all timesteps at once
        # (one MXU call, off the serial chain).
        xg0 = jnp.dot(x_ref[...], w_ih[0],
                      preferred_element_type=jnp.float32) + bias[0]     # (T,4H)

        # Recurrent state lives in registers, never written to VMEM.
        h = [h0_ref[l:l + 1, :] for l in range(num_layers)]             # (1,H)
        c = [c0_ref[l:l + 1, :] for l in range(num_layers)]             # (1,H)

        def cell_update(gates, c_prev):
            # ONE full-(1,4H) tanh + one full-vreg FMA, then static lane slices.
            act = jnp.tanh(gates) * act_scale + act_shift
            i_g = act[:, 0:H]
            f_g = act[:, H:2 * H]
            g_g = act[:, 2 * H:3 * H]
            o_g = act[:, 3 * H:4 * H]
            c_new = f_g * c_prev + i_g * g_g
            h_new = o_g * jnp.tanh(c_new)
            return h_new, c_new

        for t in range(T):                                   # fully unrolled
            # Layer 0: precomputed x-projection + recurrent dot.
            gates = xg0[t:t + 1, :] + jnp.dot(
                h[0], w_hh[0], preferred_element_type=jnp.float32)
            h[0], c[0] = cell_update(gates, c[0])

            # Stacked layers consume h_{l-1,t} directly => wavefront-shaped
            # dependency DAG (layer l step t only needs layer l-1 step t),
            # so the scheduler can overlap the two layers' chains.
            for l in range(1, num_layers):
                gates = (jnp.dot(h[l - 1], w_ih[l],
                                 preferred_element_type=jnp.float32)
                         + jnp.dot(h[l], w_hh[l],
                                   preferred_element_type=jnp.float32)
                         + bias[l])
                h[l], c[l] = cell_update(gates, c[l])

            # Park last-layer row in VMEM scratch (store is off the crit path).
            hseq_sc[t:t + 1, :] = h[num_layers - 1]

        # Final Linear for every timestep: one MXU call + one output store.
        out_ref[...] = (jnp.dot(hseq_sc[...], wfc_ref[...],
                                preferred_element_type=jnp.float32)
                        + bfc_ref[...])

    return kernel


def lstm_forward(x, layer_params, h0, c0, w_fc, b_fc):
    num_layers = len(layer_params)
    T = x.shape[0]
    H = h0.shape[1]
    O = w_fc.shape[1]

    # Host-side gate pre-scaling: halve i/f/o weight/bias columns so the kernel
    # can derive sigmoid gates from a single tanh (sigmoid(x) = 0.5*tanh(x/2)+0.5).
    col_scale = jnp.concatenate(
        [jnp.full((1, H), 0.5, jnp.float32),
         jnp.full((1, H), 0.5, jnp.float32),
         jnp.ones((1, H), jnp.float32),
         jnp.full((1, H), 0.5, jnp.float32)], axis=1)

    flat_weights = []
    for (w_ih, w_hh, b) in layer_params:
        flat_weights += [w_ih * col_scale, w_hh * col_scale, b * col_scale]

    n_inputs = 1 + 3 * num_layers + 2 + 2   # x, layer weights, h0/c0, fc w/b
    kernel = make_fused_lstm_kernel(num_layers, T, H)

    return pl.pallas_call(
        kernel,
        out_shape=jax.ShapeDtypeStruct((T, O), jnp.float32),
        in_specs=[pl.BlockSpec(memory_space=pltpu.MemorySpace.VMEM)] * n_inputs,
        out_specs=pl.BlockSpec(memory_space=pltpu.MemorySpace.VMEM),
        scratch_shapes=[pltpu.VMEM((T, H), jnp.float32)],
    )(x, *flat_weights, h0, c0, w_fc, b_fc)


# ----------------------------------------------------------------------------
# Pure-JAX reference (same math, plain sigmoid/tanh, unscaled weights).
# ----------------------------------------------------------------------------
def lstm_forward_ref(x, layer_params, h0, c0, w_fc, b_fc):
    H = h0.shape[1]
    h_seq = x
    for l, (w_ih, w_hh, b) in enumerate(layer_params):
        xg = h_seq @ w_ih + b
        h = h0[l:l + 1]
        c = c0[l:l + 1]
        rows = []
        for t in range(x.shape[0]):
            gates = xg[t:t + 1] + h @ w_hh
            i = jax.nn.sigmoid(gates[:, 0:H])
            f = jax.nn.sigmoid(gates[:, H:2 * H])
            g = jnp.tanh(gates[:, 2 * H:3 * H])
            o = jax.nn.sigmoid(gates[:, 3 * H:4 * H])
            c = f * c + i * g
            h = o * jnp.tanh(c)
            rows.append(h)
        h_seq = jnp.concatenate(rows, axis=0)
    return h_seq @ w_fc + b_fc


if __name__ == "__main__":
    input_size, hidden_size, output_size, num_layers = 16, 32, 8, 2
    seq_len = 8

    key = jax.random.PRNGKey(0)
    keys = jax.random.split(key, 4 * num_layers + 5)

    # Unbatched input (seq_len, input_size), as implied by the PyTorch forward.
    x = jax.random.normal(keys[0], (seq_len, input_size), dtype=jnp.float32)

    # forward() draws fresh randn initial states; made deterministic here.
    h0 = jax.random.normal(keys[1], (num_layers, hidden_size), dtype=jnp.float32)
    c0 = jax.random.normal(keys[2], (num_layers, hidden_size), dtype=jnp.float32)

    # PyTorch-style uniform(-1/sqrt(H), 1/sqrt(H)) init, deterministic.
    bound = 1.0 / float(jnp.sqrt(jnp.float32(hidden_size)))
    layer_params = []
    kk = 3
    for l in range(num_layers):
        d_in = input_size if l == 0 else hidden_size
        w_ih = jax.random.uniform(keys[kk], (d_in, 4 * hidden_size),
                                  minval=-bound, maxval=bound); kk += 1
        w_hh = jax.random.uniform(keys[kk], (hidden_size, 4 * hidden_size),
                                  minval=-bound, maxval=bound); kk += 1
        b_ih = jax.random.uniform(keys[kk], (1, 4 * hidden_size),
                                  minval=-bound, maxval=bound); kk += 1
        b_hh = jax.random.uniform(keys[kk], (1, 4 * hidden_size),
                                  minval=-bound, maxval=bound); kk += 1
        layer_params.append((w_ih, w_hh, b_ih + b_hh))

    w_fc = jax.random.uniform(keys[kk], (hidden_size, output_size),
                              minval=-bound, maxval=bound); kk += 1
    b_fc = jax.random.uniform(keys[kk], (1, output_size),
                              minval=-bound, maxval=bound)

    y = lstm_forward(x, layer_params, h0, c0, w_fc, b_fc)
    jax.block_until_ready(y)
    assert y.shape == (seq_len, output_size)

    y_ref = lstm_forward_ref(x, layer_params, h0, c0, w_fc, b_fc)
    assert jnp.allclose(y, y_ref, atol=1e-3, rtol=1e-3), "mismatch vs reference"

    print("KERNEL_OK")
</pallas_src>

<mosaic_0001>
module attributes {stable_mosaic.version = 11 : i64} {
  func.func @kernel(%arg0: memref<8x16xf32, #tpu.memory_space<vmem>>, %arg1: memref<16x128xf32, #tpu.memory_space<vmem>>, %arg2: memref<32x128xf32, #tpu.memory_space<vmem>>, %arg3: memref<1x128xf32, #tpu.memory_space<vmem>>, %arg4: memref<32x128xf32, #tpu.memory_space<vmem>>, %arg5: memref<32x128xf32, #tpu.memory_space<vmem>>, %arg6: memref<1x128xf32, #tpu.memory_space<vmem>>, %arg7: memref<2x32xf32, #tpu.memory_space<vmem>>, %arg8: memref<2x32xf32, #tpu.memory_space<vmem>>, %arg9: memref<32x8xf32, #tpu.memory_space<vmem>>, %arg10: memref<1x8xf32, #tpu.memory_space<vmem>>, %arg11: memref<8x8xf32, #tpu.memory_space<vmem>>, %arg12: memref<8x32xf32, #tpu.memory_space<vmem>>) attributes {dimension_semantics = [], scalar_prefetch = 0 : i64, scratch_operands = 1 : i64, tpu.core_type = #tpu.core_type<tc>} {
    %0 = tpu.iota {dimensions = array<i32: 1>} : vector<1x128xi32>
    %c64_i32 = arith.constant 64 : i32
    %1 = vector.broadcast %c64_i32 : i32 to vector<1x128xi32>
    %2 = arith.cmpi sge, %0, %1 : vector<1x128xi32>
    %c96_i32 = arith.constant 96 : i32
    %3 = vector.broadcast %c96_i32 : i32 to vector<1x128xi32>
    %4 = arith.cmpi slt, %0, %3 : vector<1x128xi32>
    %5 = arith.andi %2, %4 : vector<1x128xi1>
    %cst = arith.constant 1.000000e+00 : f32
    %cst_0 = arith.constant 5.000000e-01 : f32
    %6 = vector.broadcast %cst : f32 to vector<1x128xf32>
    %7 = vector.broadcast %cst_0 : f32 to vector<1x128xf32>
    %8 = arith.select %5, %6, %7 : vector<1x128xi1>, vector<1x128xf32>
    %cst_1 = arith.constant 0.000000e+00 : f32
    %cst_2 = arith.constant 5.000000e-01 : f32
    %9 = vector.broadcast %cst_1 : f32 to vector<1x128xf32>
    %10 = vector.broadcast %cst_2 : f32 to vector<1x128xf32>
    %11 = arith.select %5, %9, %10 : vector<1x128xi1>, vector<1x128xf32>
    %c0 = arith.constant 0 : index
    %c0_3 = arith.constant 0 : index
    %12 = vector.load %arg1[%c0, %c0_3] : memref<16x128xf32, #tpu.memory_space<vmem>>, vector<16x128xf32>
    %c0_4 = arith.constant 0 : index
    %c0_5 = arith.constant 0 : index
    %13 = vector.load %arg4[%c0_4, %c0_5] : memref<32x128xf32, #tpu.memory_space<vmem>>, vector<32x128xf32>
    %c0_6 = arith.constant 0 : index
    %c0_7 = arith.constant 0 : index
    %14 = vector.load %arg2[%c0_6, %c0_7] : memref<32x128xf32, #tpu.memory_space<vmem>>, vector<32x128xf32>
    %c0_8 = arith.constant 0 : index
    %c0_9 = arith.constant 0 : index
    %15 = vector.load %arg5[%c0_8, %c0_9] : memref<32x128xf32, #tpu.memory_space<vmem>>, vector<32x128xf32>
    %c0_10 = arith.constant 0 : index
    %c0_11 = arith.constant 0 : index
    %16 = vector.load %arg3[%c0_10, %c0_11] : memref<1x128xf32, #tpu.memory_space<vmem>>, vector<1x128xf32>
    %c0_12 = arith.constant 0 : index
    %c0_13 = arith.constant 0 : index
    %17 = vector.load %arg6[%c0_12, %c0_13] : memref<1x128xf32, #tpu.memory_space<vmem>>, vector<1x128xf32>
    %c0_14 = arith.constant 0 : index
    %c0_15 = arith.constant 0 : index
    %18 = vector.load %arg0[%c0_14, %c0_15] : memref<8x16xf32, #tpu.memory_space<vmem>>, vector<8x16xf32>
    %cst_16 = arith.constant dense<0.000000e+00> : vector<8x128xf32>
    %19 = tpu.matmul %18, %12, %cst_16 {dimension_numbers = #tpu.dot_dimension_numbers<[1], [0], [0], [1], [0, 0, 1, 1], [], []>} : vector<8x16xf32>, vector<16x128xf32>, vector<8x128xf32> -> vector<8x128xf32>
    %20 = vector.broadcast %16 : vector<1x128xf32> to vector<8x128xf32>
    %21 = arith.addf %19, %20 : vector<8x128xf32>
    %c0_17 = arith.constant 0 : index
    %c0_18 = arith.constant 0 : index
    %22 = vector.load %arg7[%c0_17, %c0_18] : memref<2x32xf32, #tpu.memory_space<vmem>>, vector<1x32xf32>
    %c1 = arith.constant 1 : index
    %c0_19 = arith.constant 0 : index
    %23 = vector.load %arg7[%c1, %c0_19] : memref<2x32xf32, #tpu.memory_space<vmem>>, vector<1x32xf32>
    %c0_20 = arith.constant 0 : index
    %c0_21 = arith.constant 0 : index
    %24 = vector.load %arg8[%c0_20, %c0_21] : memref<2x32xf32, #tpu.memory_space<vmem>>, vector<1x32xf32>
    %c1_22 = arith.constant 1 : index
    %c0_23 = arith.constant 0 : index
    %25 = vector.load %arg8[%c1_22, %c0_23] : memref<2x32xf32, #tpu.memory_space<vmem>>, vector<1x32xf32>
    %26 = vector.extract_strided_slice %21 {offsets = [0, 0], sizes = [1, 128], strides = [1, 1]} : vector<8x128xf32> to vector<1x128xf32>
    %cst_24 = arith.constant dense<0.000000e+00> : vector<1x128xf32>
    %27 = tpu.matmul %22, %14, %cst_24 {dimension_numbers = #tpu.dot_dimension_numbers<[1], [0], [0], [1], [0, 0, 1, 1], [], []>} : vector<1x32xf32>, vector<32x128xf32>, vector<1x128xf32> -> vector<1x128xf32>
    %28 = arith.addf %26, %27 : vector<1x128xf32>
    %29 = math.tanh %28 : vector<1x128xf32>
    %30 = arith.mulf %29, %8 : vector<1x128xf32>
    %31 = arith.addf %30, %11 : vector<1x128xf32>
    %32 = vector.extract_strided_slice %31 {offsets = [0, 0], sizes = [1, 32], strides = [1, 1]} : vector<1x128xf32> to vector<1x32xf32>
    %33 = vector.extract_strided_slice %31 {offsets = [0, 32], sizes = [1, 32], strides = [1, 1]} : vector<1x128xf32> to vector<1x32xf32>
    %34 = vector.extract_strided_slice %31 {offsets = [0, 64], sizes = [1, 32], strides = [1, 1]} : vector<1x128xf32> to vector<1x32xf32>
    %35 = vector.extract_strided_slice %31 {offsets = [0, 96], sizes = [1, 32], strides = [1, 1]} : vector<1x128xf32> to vector<1x32xf32>
    %36 = arith.mulf %33, %24 : vector<1x32xf32>
    %37 = arith.mulf %32, %34 : vector<1x32xf32>
    %38 = arith.addf %36, %37 : vector<1x32xf32>
    %39 = math.tanh %38 : vector<1x32xf32>
    %40 = arith.mulf %35, %39 : vector<1x32xf32>
    %cst_25 = arith.constant dense<0.000000e+00> : vector<1x128xf32>
    %41 = tpu.matmul %40, %13, %cst_25 {dimension_numbers = #tpu.dot_dimension_numbers<[1], [0], [0], [1], [0, 0, 1, 1], [], []>} : vector<1x32xf32>, vector<32x128xf32>, vector<1x128xf32> -> vector<1x128xf32>
    %cst_26 = arith.constant dense<0.000000e+00> : vector<1x128xf32>
    %42 = tpu.matmul %23, %15, %cst_26 {dimension_numbers = #tpu.dot_dimension_numbers<[1], [0], [0], [1], [0, 0, 1, 1], [], []>} : vector<1x32xf32>, vector<32x128xf32>, vector<1x128xf32> -> vector<1x128xf32>
    %43 = arith.addf %41, %42 : vector<1x128xf32>
    %44 = arith.addf %43, %17 : vector<1x128xf32>
    %45 = math.tanh %44 : vector<1x128xf32>
    %46 = arith.mulf %45, %8 : vector<1x128xf32>
    %47 = arith.addf %46, %11 : vector<1x128xf32>
    %48 = vector.extract_strided_slice %47 {offsets = [0, 0], sizes = [1, 32], strides = [1, 1]} : vector<1x128xf32> to vector<1x32xf32>
    %49 = vector.extract_strided_slice %47 {offsets = [0, 32], sizes = [1, 32], strides = [1, 1]} : vector<1x128xf32> to vector<1x32xf32>
    %50 = vector.extract_strided_slice %47 {offsets = [0, 64], sizes = [1, 32], strides = [1, 1]} : vector<1x128xf32> to vector<1x32xf32>
    %51 = vector.extract_strided_slice %47 {offsets = [0, 96], sizes = [1, 32], strides = [1, 1]} : vector<1x128xf32> to vector<1x32xf32>
    %52 = arith.mulf %49, %25 : vector<1x32xf32>
    %53 = arith.mulf %48, %50 : vector<1x32xf32>
    %54 = arith.addf %52, %53 : vector<1x32xf32>
    %55 = math.tanh %54 : vector<1x32xf32>
    %56 = arith.mulf %51, %55 : vector<1x32xf32>
    %c0_27 = arith.constant 0 : index
    %c0_28 = arith.constant 0 : index
    %57 = vector.load %arg12[%c0_27, %c0_28] : memref<8x32xf32, #tpu.memory_space<vmem>>, vector<1x32xf32>
    tpu.vector_store %arg12[%c0_27, %c0_28], %56 {strides = array<i32>} : memref<8x32xf32, #tpu.memory_space<vmem>>, vector<1x32xf32>,
    %58 = vector.extract_strided_slice %21 {offsets = [1, 0], sizes = [1, 128], strides = [1, 1]} : vector<8x128xf32> to vector<1x128xf32>
    %cst_29 = arith.constant dense<0.000000e+00> : vector<1x128xf32>
    %59 = tpu.matmul %40, %14, %cst_29 {dimension_numbers = #tpu.dot_dimension_numbers<[1], [0], [0], [1], [0, 0, 1, 1], [], []>} : vector<1x32xf32>, vector<32x128xf32>, vector<1x128xf32> -> vector<1x128xf32>
    %60 = arith.addf %58, %59 : vector<1x128xf32>
    %61 = math.tanh %60 : vector<1x128xf32>
    %62 = arith.mulf %61, %8 : vector<1x128xf32>
    %63 = arith.addf %62, %11 : vector<1x128xf32>
    %64 = vector.extract_strided_slice %63 {offsets = [0, 0], sizes = [1, 32], strides = [1, 1]} : vector<1x128xf32> to vector<1x32xf32>
    %65 = vector.extract_strided_slice %63 {offsets = [0, 32], sizes = [1, 32], strides = [1, 1]} : vector<1x128xf32> to vector<1x32xf32>
    %66 = vector.extract_strided_slice %63 {offsets = [0, 64], sizes = [1, 32], strides = [1, 1]} : vector<1x128xf32> to vector<1x32xf32>
    %67 = vector.extract_strided_slice %63 {offsets = [0, 96], sizes = [1, 32], strides = [1, 1]} : vector<1x128xf32> to vector<1x32xf32>
    %68 = arith.mulf %65, %38 : vector<1x32xf32>
    %69 = arith.mulf %64, %66 : vector<1x32xf32>
    %70 = arith.addf %68, %69 : vector<1x32xf32>
    %71 = math.tanh %70 : vector<1x32xf32>
    %72 = arith.mulf %67, %71 : vector<1x32xf32>
    %cst_30 = arith.constant dense<0.000000e+00> : vector<1x128xf32>
    %73 = tpu.matmul %72, %13, %cst_30 {dimension_numbers = #tpu.dot_dimension_numbers<[1], [0], [0], [1], [0, 0, 1, 1], [], []>} : vector<1x32xf32>, vector<32x128xf32>, vector<1x128xf32> -> vector<1x128xf32>
    %cst_31 = arith.constant dense<0.000000e+00> : vector<1x128xf32>
    %74 = tpu.matmul %56, %15, %cst_31 {dimension_numbers = #tpu.dot_dimension_numbers<[1], [0], [0], [1], [0, 0, 1, 1], [], []>} : vector<1x32xf32>, vector<32x128xf32>, vector<1x128xf32> -> vector<1x128xf32>
    %75 = arith.addf %73, %74 : vector<1x128xf32>
    %76 = arith.addf %75, %17 : vector<1x128xf32>
    %77 = math.tanh %76 : vector<1x128xf32>
    %78 = arith.mulf %77, %8 : vector<1x128xf32>
    %79 = arith.addf %78, %11 : vector<1x128xf32>
    %80 = vector.extract_strided_slice %79 {offsets = [0, 0], sizes = [1, 32], strides = [1, 1]} : vector<1x128xf32> to vector<1x32xf32>
    %81 = vector.extract_strided_slice %79 {offsets = [0, 32], sizes = [1, 32], strides = [1, 1]} : vector<1x128xf32> to vector<1x32xf32>
    %82 = vector.extract_strided_slice %79 {offsets = [0, 64], sizes = [1, 32], strides = [1, 1]} : vector<1x128xf32> to vector<1x32xf32>
    %83 = vector.extract_strided_slice %79 {offsets = [0, 96], sizes = [1, 32], strides = [1, 1]} : vector<1x128xf32> to vector<1x32xf32>
    %84 = arith.mulf %81, %54 : vector<1x32xf32>
    %85 = arith.mulf %80, %82 : vector<1x32xf32>
    %86 = arith.addf %84, %85 : vector<1x32xf32>
    %87 = math.tanh %86 : vector<1x32xf32>
    %88 = arith.mulf %83, %87 : vector<1x32xf32>
    %c1_32 = arith.constant 1 : index
    %c0_33 = arith.constant 0 : index
    %89 = vector.load %arg12[%c1_32, %c0_33] : memref<8x32xf32, #tpu.memory_space<vmem>>, vector<1x32xf32>
    tpu.vector_store %arg12[%c1_32, %c0_33], %88 {strides = array<i32>} : memref<8x32xf32, #tpu.memory_space<vmem>>, vector<1x32xf32>,
    %90 = vector.extract_strided_slice %21 {offsets = [2, 0], sizes = [1, 128], strides = [1, 1]} : vector<8x128xf32> to vector<1x128xf32>
    %cst_34 = arith.constant dense<0.000000e+00> : vector<1x128xf32>
    %91 = tpu.matmul %72, %14, %cst_34 {dimension_numbers = #tpu.dot_dimension_numbers<[1], [0], [0], [1], [0, 0, 1, 1], [], []>} : vector<1x32xf32>, vector<32x128xf32>, vector<1x128xf32> -> vector<1x128xf32>
    %92 = arith.addf %90, %91 : vector<1x128xf32>
    %93 = math.tanh %92 : vector<1x128xf32>
    %94 = arith.mulf %93, %8 : vector<1x128xf32>
    %95 = arith.addf %94, %11 : vector<1x128xf32>
    %96 = vector.extract_strided_slice %95 {offsets = [0, 0], sizes = [1, 32], strides = [1, 1]} : vector<1x128xf32> to vector<1x32xf32>
    %97 = vector.extract_strided_slice %95 {offsets = [0, 32], sizes = [1, 32], strides = [1, 1]} : vector<1x128xf32> to vector<1x32xf32>
    %98 = vector.extract_strided_slice %95 {offsets = [0, 64], sizes = [1, 32], strides = [1, 1]} : vector<1x128xf32> to vector<1x32xf32>
    %99 = vector.extract_strided_slice %95 {offsets = [0, 96], sizes = [1, 32], strides = [1, 1]} : vector<1x128xf32> to vector<1x32xf32>
    %100 = arith.mulf %97, %70 : vector<1x32xf32>
    %101 = arith.mulf %96, %98 : vector<1x32xf32>
    %102 = arith.addf %100, %101 : vector<1x32xf32>
    %103 = math.tanh %102 : vector<1x32xf32>
    %104 = arith.mulf %99, %103 : vector<1x32xf32>
    %cst_35 = arith.constant dense<0.000000e+00> : vector<1x128xf32>
    %105 = tpu.matmul %104, %13, %cst_35 {dimension_numbers = #tpu.dot_dimension_numbers<[1], [0], [0], [1], [0, 0, 1, 1], [], []>} : vector<1x32xf32>, vector<32x128xf32>, vector<1x128xf32> -> vector<1x128xf32>
    %cst_36 = arith.constant dense<0.000000e+00> : vector<1x128xf32>
    %106 = tpu.matmul %88, %15, %cst_36 {dimension_numbers = #tpu.dot_dimension_numbers<[1], [0], [0], [1], [0, 0, 1, 1], [], []>} : vector<1x32xf32>, vector<32x128xf32>, vector<1x128xf32> -> vector<1x128xf32>
    %107 = arith.addf %105, %106 : vector<1x128xf32>
    %108 = arith.addf %107, %17 : vector<1x128xf32>
    %109 = math.tanh %108 : vector<1x128xf32>
    %110 = arith.mulf %109, %8 : vector<1x128xf32>
    %111 = arith.addf %110, %11 : vector<1x128xf32>
    %112 = vector.extract_strided_slice %111 {offsets = [0, 0], sizes = [1, 32], strides = [1, 1]} : vector<1x128xf32> to vector<1x32xf32>
    %113 = vector.extract_strided_slice %111 {offsets = [0, 32], sizes = [1, 32], strides = [1, 1]} : vector<1x128xf32> to vector<1x32xf32>
    %114 = vector.extract_strided_slice %111 {offsets = [0, 64], sizes = [1, 32], strides = [1, 1]} : vector<1x128xf32> to vector<1x32xf32>
    %115 = vector.extract_strided_slice %111 {offsets = [0, 96], sizes = [1, 32], strides = [1, 1]} : vector<1x128xf32> to vector<1x32xf32>
    %116 = arith.mulf %113, %86 : vector<1x32xf32>
    %117 = arith.mulf %112, %114 : vector<1x32xf32>
    %118 = arith.addf %116, %117 : vector<1x32xf32>
    %119 = math.tanh %118 : vector<1x32xf32>
    %120 = arith.mulf %115, %119 : vector<1x32xf32>
    %c2 = arith.constant 2 : index
    %c0_37 = arith.constant 0 : index
    %121 = vector.load %arg12[%c2, %c0_37] : memref<8x32xf32, #tpu.memory_space<vmem>>, vector<1x32xf32>
    tpu.vector_store %arg12[%c2, %c0_37], %120 {strides = array<i32>} : memref<8x32xf32, #tpu.memory_space<vmem>>, vector<1x32xf32>,
    %122 = vector.extract_strided_slice %21 {offsets = [3, 0], sizes = [1, 128], strides = [1, 1]} : vector<8x128xf32> to vector<1x128xf32>
    %cst_38 = arith.constant dense<0.000000e+00> : vector<1x128xf32>
    %123 = tpu.matmul %104, %14, %cst_38 {dimension_numbers = #tpu.dot_dimension_numbers<[1], [0], [0], [1], [0, 0, 1, 1], [], []>} : vector<1x32xf32>, vector<32x128xf32>, vector<1x128xf32> -> vector<1x128xf32>
    %124 = arith.addf %122, %123 : vector<1x128xf32>
    %125 = math.tanh %124 : vector<1x128xf32>
    %126 = arith.mulf %125, %8 : vector<1x128xf32>
    %127 = arith.addf %126, %11 : vector<1x128xf32>
    %128 = vector.extract_strided_slice %127 {offsets = [0, 0], sizes = [1, 32], strides = [1, 1]} : vector<1x128xf32> to vector<1x32xf32>
    %129 = vector.extract_strided_slice %127 {offsets = [0, 32], sizes = [1, 32], strides = [1, 1]} : vector<1x128xf32> to vector<1x32xf32>
    %130 = vector.extract_strided_slice %127 {offsets = [0, 64], sizes = [1, 32], strides = [1, 1]} : vector<1x128xf32> to vector<1x32xf32>
    %131 = vector.extract_strided_slice %127 {offsets = [0, 96], sizes = [1, 32], strides = [1, 1]} : vector<1x128xf32> to vector<1x32xf32>
    %132 = arith.mulf %129, %102 : vector<1x32xf32>
    %133 = arith.mulf %128, %130 : vector<1x32xf32>
    %134 = arith.addf %132, %133 : vector<1x32xf32>
    %135 = math.tanh %134 : vector<1x32xf32>
    %136 = arith.mulf %131, %135 : vector<1x32xf32>
    %cst_39 = arith.constant dense<0.000000e+00> : vector<1x128xf32>
    %137 = tpu.matmul %136, %13, %cst_39 {dimension_numbers = #tpu.dot_dimension_numbers<[1], [0], [0], [1], [0, 0, 1, 1], [], []>} : vector<1x32xf32>, vector<32x128xf32>, vector<1x128xf32> -> vector<1x128xf32>
    %cst_40 = arith.constant dense<0.000000e+00> : vector<1x128xf32>
    %138 = tpu.matmul %120, %15, %cst_40 {dimension_numbers = #tpu.dot_dimension_numbers<[1], [0], [0], [1], [0, 0, 1, 1], [], []>} : vector<1x32xf32>, vector<32x128xf32>, vector<1x128xf32> -> vector<1x128xf32>
    %139 = arith.addf %137, %138 : vector<1x128xf32>
    %140 = arith.addf %139, %17 : vector<1x128xf32>
    %141 = math.tanh %140 : vector<1x128xf32>
    %142 = arith.mulf %141, %8 : vector<1x128xf32>
    %143 = arith.addf %142, %11 : vector<1x128xf32>
    %144 = vector.extract_strided_slice %143 {offsets = [0, 0], sizes = [1, 32], strides = [1, 1]} : vector<1x128xf32> to vector<1x32xf32>
    %145 = vector.extract_strided_slice %143 {offsets = [0, 32], sizes = [1, 32], strides = [1, 1]} : vector<1x128xf32> to vector<1x32xf32>
    %146 = vector.extract_strided_slice %143 {offsets = [0, 64], sizes = [1, 32], strides = [1, 1]} : vector<1x128xf32> to vector<1x32xf32>
    %147 = vector.extract_strided_slice %143 {offsets = [0, 96], sizes = [1, 32], strides = [1, 1]} : vector<1x128xf32> to vector<1x32xf32>
    %148 = arith.mulf %145, %118 : vector<1x32xf32>
    %149 = arith.mulf %144, %146 : vector<1x32xf32>
    %150 = arith.addf %148, %149 : vector<1x32xf32>
    %151 = math.tanh %150 : vector<1x32xf32>
    %152 = arith.mulf %147, %151 : vector<1x32xf32>
    %c3 = arith.constant 3 : index
    %c0_41 = arith.constant 0 : index
    %153 = vector.load %arg12[%c3, %c0_41] : memref<8x32xf32, #tpu.memory_space<vmem>>, vector<1x32xf32>
    tpu.vector_store %arg12[%c3, %c0_41], %152 {strides = array<i32>} : memref<8x32xf32, #tpu.memory_space<vmem>>, vector<1x32xf32>,
    %154 = vector.extract_strided_slice %21 {offsets = [4, 0], sizes = [1, 128], strides = [1, 1]} : vector<8x128xf32> to vector<1x128xf32>
    %cst_42 = arith.constant dense<0.000000e+00> : vector<1x128xf32>
    %155 = tpu.matmul %136, %14, %cst_42 {dimension_numbers = #tpu.dot_dimension_numbers<[1], [0], [0], [1], [0, 0, 1, 1], [], []>} : vector<1x32xf32>, vector<32x128xf32>, vector<1x128xf32> -> vector<1x128xf32>
    %156 = arith.addf %154, %155 : vector<1x128xf32>
    %157 = math.tanh %156 : vector<1x128xf32>
    %158 = arith.mulf %157, %8 : vector<1x128xf32>
    %159 = arith.addf %158, %11 : vector<1x128xf32>
    %160 = vector.extract_strided_slice %159 {offsets = [0, 0], sizes = [1, 32], strides = [1, 1]} : vector<1x128xf32> to vector<1x32xf32>
    %161 = vector.extract_strided_slice %159 {offsets = [0, 32], sizes = [1, 32], strides = [1, 1]} : vector<1x128xf32> to vector<1x32xf32>
    %162 = vector.extract_strided_slice %159 {offsets = [0, 64], sizes = [1, 32], strides = [1, 1]} : vector<1x128xf32> to vector<1x32xf32>
    %163 = vector.extract_strided_slice %159 {offsets = [0, 96], sizes = [1, 32], strides = [1, 1]} : vector<1x128xf32> to vector<1x32xf32>
    %164 = arith.mulf %161, %134 : vector<1x32xf32>
    %165 = arith.mulf %160, %162 : vector<1x32xf32>
    %166 = arith.addf %164, %165 : vector<1x32xf32>
    %167 = math.tanh %166 : vector<1x32xf32>
    %168 = arith.mulf %163, %167 : vector<1x32xf32>
    %cst_43 = arith.constant dense<0.000000e+00> : vector<1x128xf32>
    %169 = tpu.matmul %168, %13, %cst_43 {dimension_numbers = #tpu.dot_dimension_numbers<[1], [0], [0], [1], [0, 0, 1, 1], [], []>} : vector<1x32xf32>, vector<32x128xf32>, vector<1x128xf32> -> vector<1x128xf32>
    %cst_44 = arith.constant dense<0.000000e+00> : vector<1x128xf32>
    %170 = tpu.matmul %152, %15, %cst_44 {dimension_numbers = #tpu.dot_dimension_numbers<[1], [0], [0], [1], [0, 0, 1, 1], [], []>} : vector<1x32xf32>, vector<32x128xf32>, vector<1x128xf32> -> vector<1x128xf32>
    %171 = arith.addf %169, %170 : vector<1x128xf32>
    %172 = arith.addf %171, %17 : vector<1x128xf32>
    %173 = math.tanh %172 : vector<1x128xf32>
    %174 = arith.mulf %173, %8 : vector<1x128xf32>
    %175 = arith.addf %174, %11 : vector<1x128xf32>
    %176 = vector.extract_strided_slice %175 {offsets = [0, 0], sizes = [1, 32], strides = [1, 1]} : vector<1x128xf32> to vector<1x32xf32>
    %177 = vector.extract_strided_slice %175 {offsets = [0, 32], sizes = [1, 32], strides = [1, 1]} : vector<1x128xf32> to vector<1x32xf32>
    %178 = vector.extract_strided_slice %175 {offsets = [0, 64], sizes = [1, 32], strides = [1, 1]} : vector<1x128xf32> to vector<1x32xf32>
    %179 = vector.extract_strided_slice %175 {offsets = [0, 96], sizes = [1, 32], strides = [1, 1]} : vector<1x128xf32> to vector<1x32xf32>
    %180 = arith.mulf %177, %150 : vector<1x32xf32>
    %181 = arith.mulf %176, %178 : vector<1x32xf32>
    %182 = arith.addf %180, %181 : vector<1x32xf32>
    %183 = math.tanh %182 : vector<1x32xf32>
    %184 = arith.mulf %179, %183 : vector<1x32xf32>
    %c4 = arith.constant 4 : index
    %c0_45 = arith.constant 0 : index
    %185 = vector.load %arg12[%c4, %c0_45] : memref<8x32xf32, #tpu.memory_space<vmem>>, vector<1x32xf32>
    tpu.vector_store %arg12[%c4, %c0_45], %184 {strides = array<i32>} : memref<8x32xf32, #tpu.memory_space<vmem>>, vector<1x32xf32>,
    %186 = vector.extract_strided_slice %21 {offsets = [5, 0], sizes = [1, 128], strides = [1, 1]} : vector<8x128xf32> to vector<1x128xf32>
    %cst_46 = arith.constant dense<0.000000e+00> : vector<1x128xf32>
    %187 = tpu.matmul %168, %14, %cst_46 {dimension_numbers = #tpu.dot_dimension_numbers<[1], [0], [0], [1], [0, 0, 1, 1], [], []>} : vector<1x32xf32>, vector<32x128xf32>, vector<1x128xf32> -> vector<1x128xf32>
    %188 = arith.addf %186, %187 : vector<1x128xf32>
    %189 = math.tanh %188 : vector<1x128xf32>
    %190 = arith.mulf %189, %8 : vector<1x128xf32>
    %191 = arith.addf %190, %11 : vector<1x128xf32>
    %192 = vector.extract_strided_slice %191 {offsets = [0, 0], sizes = [1, 32], strides = [1, 1]} : vector<1x128xf32> to vector<1x32xf32>
    %193 = vector.extract_strided_slice %191 {offsets = [0, 32], sizes = [1, 32], strides = [1, 1]} : vector<1x128xf32> to vector<1x32xf32>
    %194 = vector.extract_strided_slice %191 {offsets = [0, 64], sizes = [1, 32], strides = [1, 1]} : vector<1x128xf32> to vector<1x32xf32>
    %195 = vector.extract_strided_slice %191 {offsets = [0, 96], sizes = [1, 32], strides = [1, 1]} : vector<1x128xf32> to vector<1x32xf32>
    %196 = arith.mulf %193, %166 : vector<1x32xf32>
    %197 = arith.mulf %192, %194 : vector<1x32xf32>
    %198 = arith.addf %196, %197 : vector<1x32xf32>
    %199 = math.tanh %198 : vector<1x32xf32>
    %200 = arith.mulf %195, %199 : vector<1x32xf32>
    %cst_47 = arith.constant dense<0.000000e+00> : vector<1x128xf32>
    %201 = tpu.matmul %200, %13, %cst_47 {dimension_numbers = #tpu.dot_dimension_numbers<[1], [0], [0], [1], [0, 0, 1, 1], [], []>} : vector<1x32xf32>, vector<32x128xf32>, vector<1x128xf32> -> vector<1x128xf32>
    %cst_48 = arith.constant dense<0.000000e+00> : vector<1x128xf32>
    %202 = tpu.matmul %184, %15, %cst_48 {dimension_numbers = #tpu.dot_dimension_numbers<[1], [0], [0], [1], [0, 0, 1, 1], [], []>} : vector<1x32xf32>, vector<32x128xf32>, vector<1x128xf32> -> vector<1x128xf32>
    %203 = arith.addf %201, %202 : vector<1x128xf32>
    %204 = arith.addf %203, %17 : vector<1x128xf32>
    %205 = math.tanh %204 : vector<1x128xf32>
    %206 = arith.mulf %205, %8 : vector<1x128xf32>
    %207 = arith.addf %206, %11 : vector<1x128xf32>
    %208 = vector.extract_strided_slice %207 {offsets = [0, 0], sizes = [1, 32], strides = [1, 1]} : vector<1x128xf32> to vector<1x32xf32>
    %209 = vector.extract_strided_slice %207 {offsets = [0, 32], sizes = [1, 32], strides = [1, 1]} : vector<1x128xf32> to vector<1x32xf32>
    %210 = vector.extract_strided_slice %207 {offsets = [0, 64], sizes = [1, 32], strides = [1, 1]} : vector<1x128xf32> to vector<1x32xf32>
    %211 = vector.extract_strided_slice %207 {offsets = [0, 96], sizes = [1, 32], strides = [1, 1]} : vector<1x128xf32> to vector<1x32xf32>
    %212 = arith.mulf %209, %182 : vector<1x32xf32>
    %213 = arith.mulf %208, %210 : vector<1x32xf32>
    %214 = arith.addf %212, %213 : vector<1x32xf32>
    %215 = math.tanh %214 : vector<1x32xf32>
    %216 = arith.mulf %211, %215 : vector<1x32xf32>
    %c5 = arith.constant 5 : index
    %c0_49 = arith.constant 0 : index
    %217 = vector.load %arg12[%c5, %c0_49] : memref<8x32xf32, #tpu.memory_space<vmem>>, vector<1x32xf32>
    tpu.vector_store %arg12[%c5, %c0_49], %216 {strides = array<i32>} : memref<8x32xf32, #tpu.memory_space<vmem>>, vector<1x32xf32>,
    %218 = vector.extract_strided_slice %21 {offsets = [6, 0], sizes = [1, 128], strides = [1, 1]} : vector<8x128xf32> to vector<1x128xf32>
    %cst_50 = arith.constant dense<0.000000e+00> : vector<1x128xf32>
    %219 = tpu.matmul %200, %14, %cst_50 {dimension_numbers = #tpu.dot_dimension_numbers<[1], [0], [0], [1], [0, 0, 1, 1], [], []>} : vector<1x32xf32>, vector<32x128xf32>, vector<1x128xf32> -> vector<1x128xf32>
    %220 = arith.addf %218, %219 : vector<1x128xf32>
    %221 = math.tanh %220 : vector<1x128xf32>
    %222 = arith.mulf %221, %8 : vector<1x128xf32>
    %223 = arith.addf %222, %11 : vector<1x128xf32>
    %224 = vector.extract_strided_slice %223 {offsets = [0, 0], sizes = [1, 32], strides = [1, 1]} : vector<1x128xf32> to vector<1x32xf32>
    %225 = vector.extract_strided_slice %223 {offsets = [0, 32], sizes = [1, 32], strides = [1, 1]} : vector<1x128xf32> to vector<1x32xf32>
    %226 = vector.extract_strided_slice %223 {offsets = [0, 64], sizes = [1, 32], strides = [1, 1]} : vector<1x128xf32> to vector<1x32xf32>
    %227 = vector.extract_strided_slice %223 {offsets = [0, 96], sizes = [1, 32], strides = [1, 1]} : vector<1x128xf32> to vector<1x32xf32>
    %228 = arith.mulf %225, %198 : vector<1x32xf32>
    %229 = arith.mulf %224, %226 : vector<1x32xf32>
    %230 = arith.addf %228, %229 : vector<1x32xf32>
    %231 = math.tanh %230 : vector<1x32xf32>
    %232 = arith.mulf %227, %231 : vector<1x32xf32>
    %cst_51 = arith.constant dense<0.000000e+00> : vector<1x128xf32>
    %233 = tpu.matmul %232, %13, %cst_51 {dimension_numbers = #tpu.dot_dimension_numbers<[1], [0], [0], [1], [0, 0, 1, 1], [], []>} : vector<1x32xf32>, vector<32x128xf32>, vector<1x128xf32> -> vector<1x128xf32>
    %cst_52 = arith.constant dense<0.000000e+00> : vector<1x128xf32>
    %234 = tpu.matmul %216, %15, %cst_52 {dimension_numbers = #tpu.dot_dimension_numbers<[1], [0], [0], [1], [0, 0, 1, 1], [], []>} : vector<1x32xf32>, vector<32x128xf32>, vector<1x128xf32> -> vector<1x128xf32>
    %235 = arith.addf %233, %234 : vector<1x128xf32>
    %236 = arith.addf %235, %17 : vector<1x128xf32>
    %237 = math.tanh %236 : vector<1x128xf32>
    %238 = arith.mulf %237, %8 : vector<1x128xf32>
    %239 = arith.addf %238, %11 : vector<1x128xf32>
    %240 = vector.extract_strided_slice %239 {offsets = [0, 0], sizes = [1, 32], strides = [1, 1]} : vector<1x128xf32> to vector<1x32xf32>
    %241 = vector.extract_strided_slice %239 {offsets = [0, 32], sizes = [1, 32], strides = [1, 1]} : vector<1x128xf32> to vector<1x32xf32>
    %242 = vector.extract_strided_slice %239 {offsets = [0, 64], sizes = [1, 32], strides = [1, 1]} : vector<1x128xf32> to vector<1x32xf32>
    %243 = vector.extract_strided_slice %239 {offsets = [0, 96], sizes = [1, 32], strides = [1, 1]} : vector<1x128xf32> to vector<1x32xf32>
    %244 = arith.mulf %241, %214 : vector<1x32xf32>
    %245 = arith.mulf %240, %242 : vector<1x32xf32>
    %246 = arith.addf %244, %245 : vector<1x32xf32>
    %247 = math.tanh %246 : vector<1x32xf32>
    %248 = arith.mulf %243, %247 : vector<1x32xf32>
    %c6 = arith.constant 6 : index
    %c0_53 = arith.constant 0 : index
    %249 = vector.load %arg12[%c6, %c0_53] : memref<8x32xf32, #tpu.memory_space<vmem>>, vector<1x32xf32>
    tpu.vector_store %arg12[%c6, %c0_53], %248 {strides = array<i32>} : memref<8x32xf32, #tpu.memory_space<vmem>>, vector<1x32xf32>,
    %250 = vector.extract_strided_slice %21 {offsets = [7, 0], sizes = [1, 128], strides = [1, 1]} : vector<8x128xf32> to vector<1x128xf32>
    %cst_54 = arith.constant dense<0.000000e+00> : vector<1x128xf32>
    %251 = tpu.matmul %232, %14, %cst_54 {dimension_numbers = #tpu.dot_dimension_numbers<[1], [0], [0], [1], [0, 0, 1, 1], [], []>} : vector<1x32xf32>, vector<32x128xf32>, vector<1x128xf32> -> vector<1x128xf32>
    %252 = arith.addf %250, %251 : vector<1x128xf32>
    %253 = math.tanh %252 : vector<1x128xf32>
    %254 = arith.mulf %253, %8 : vector<1x128xf32>
    %255 = arith.addf %254, %11 : vector<1x128xf32>
    %256 = vector.extract_strided_slice %255 {offsets = [0, 0], sizes = [1, 32], strides = [1, 1]} : vector<1x128xf32> to vector<1x32xf32>
    %257 = vector.extract_strided_slice %255 {offsets = [0, 32], sizes = [1, 32], strides = [1, 1]} : vector<1x128xf32> to vector<1x32xf32>
    %258 = vector.extract_strided_slice %255 {offsets = [0, 64], sizes = [1, 32], strides = [1, 1]} : vector<1x128xf32> to vector<1x32xf32>
    %259 = vector.extract_strided_slice %255 {offsets = [0, 96], sizes = [1, 32], strides = [1, 1]} : vector<1x128xf32> to vector<1x32xf32>
    %260 = arith.mulf %257, %230 : vector<1x32xf32>
    %261 = arith.mulf %256, %258 : vector<1x32xf32>
    %262 = arith.addf %260, %261 : vector<1x32xf32>
    %263 = math.tanh %262 : vector<1x32xf32>
    %264 = arith.mulf %259, %263 : vector<1x32xf32>
    %cst_55 = arith.constant dense<0.000000e+00> : vector<1x128xf32>
    %265 = tpu.matmul %264, %13, %cst_55 {dimension_numbers = #tpu.dot_dimension_numbers<[1], [0], [0], [1], [0, 0, 1, 1], [], []>} : vector<1x32xf32>, vector<32x128xf32>, vector<1x128xf32> -> vector<1x128xf32>
    %cst_56 = arith.constant dense<0.000000e+00> : vector<1x128xf32>
    %266 = tpu.matmul %248, %15, %cst_56 {dimension_numbers = #tpu.dot_dimension_numbers<[1], [0], [0], [1], [0, 0, 1, 1], [], []>} : vector<1x32xf32>, vector<32x128xf32>, vector<1x128xf32> -> vector<1x128xf32>
    %267 = arith.addf %265, %266 : vector<1x128xf32>
    %268 = arith.addf %267, %17 : vector<1x128xf32>
    %269 = math.tanh %268 : vector<1x128xf32>
    %270 = arith.mulf %269, %8 : vector<1x128xf32>
    %271 = arith.addf %270, %11 : vector<1x128xf32>
    %272 = vector.extract_strided_slice %271 {offsets = [0, 0], sizes = [1, 32], strides = [1, 1]} : vector<1x128xf32> to vector<1x32xf32>
    %273 = vector.extract_strided_slice %271 {offsets = [0, 32], sizes = [1, 32], strides = [1, 1]} : vector<1x128xf32> to vector<1x32xf32>
    %274 = vector.extract_strided_slice %271 {offsets = [0, 64], sizes = [1, 32], strides = [1, 1]} : vector<1x128xf32> to vector<1x32xf32>
    %275 = vector.extract_strided_slice %271 {offsets = [0, 96], sizes = [1, 32], strides = [1, 1]} : vector<1x128xf32> to vector<1x32xf32>
    %276 = arith.mulf %273, %246 : vector<1x32xf32>
    %277 = arith.mulf %272, %274 : vector<1x32xf32>
    %278 = arith.addf %276, %277 : vector<1x32xf32>
    %279 = math.tanh %278 : vector<1x32xf32>
    %280 = arith.mulf %275, %279 : vector<1x32xf32>
    %c7 = arith.constant 7 : index
    %c0_57 = arith.constant 0 : index
    %281 = vector.load %arg12[%c7, %c0_57] : memref<8x32xf32, #tpu.memory_space<vmem>>, vector<1x32xf32>
    tpu.vector_store %arg12[%c7, %c0_57], %280 {strides = array<i32>} : memref<8x32xf32, #tpu.memory_space<vmem>>, vector<1x32xf32>,
    %c0_58 = arith.constant 0 : index
    %c0_59 = arith.constant 0 : index
    %282 = vector.load %arg12[%c0_58, %c0_59] : memref<8x32xf32, #tpu.memory_space<vmem>>, vector<8x32xf32>
    %c0_60 = arith.constant 0 : index
    %c0_61 = arith.constant 0 : index
    %283 = vector.load %arg9[%c0_60, %c0_61] : memref<32x8xf32, #tpu.memory_space<vmem>>, vector<32x8xf32>
    %cst_62 = arith.constant dense<0.000000e+00> : vector<8x8xf32>
    %284 = tpu.matmul %282, %283, %cst_62 {dimension_numbers = #tpu.dot_dimension_numbers<[1], [0], [0], [1], [0, 0, 1, 1], [], []>} : vector<8x32xf32>, vector<32x8xf32>, vector<8x8xf32> -> vector<8x8xf32>
    %c0_63 = arith.constant 0 : index
    %c0_64 = arith.constant 0 : index
    %285 = vector.load %arg10[%c0_63, %c0_64] : memref<1x8xf32, #tpu.memory_space<vmem>>, vector<1x8xf32>
    %286 = vector.broadcast %285 : vector<1x8xf32> to vector<8x8xf32>
    %287 = arith.addf %284, %286 : vector<8x8xf32>
    %c0_65 = arith.constant 0 : index
    %c0_66 = arith.constant 0 : index
    %288 = vector.load %arg11[%c0_65, %c0_66] : memref<8x8xf32, #tpu.memory_space<vmem>>, vector<8x8xf32>
    tpu.vector_store %arg11[%c0_65, %c0_66], %287 {strides = array<i32>} : memref<8x8xf32, #tpu.memory_space<vmem>>, vector<8x8xf32>,
    return
  }
}

</mosaic_0001>

<llo_original>
// kernel: tpu_custom_call.1
$region0: #{tpu_custom_call.1}
  #allocation0 [shape = 'u32[]', space=smem, size = 0x4, offset = 0x4, fixed_abs, tag = 'smem constant byte address 0x4 - core index']
  #allocation1 [shape = 'u32[144,128]{1,0:T(1,128)}', space=vmem, size = 0x12000, scoped, tag = 'internal scratch']
  #allocation2 [shape = 'f32[8,32]{1,0:T(8,128)}', space=vmem, size = 0x1000, scoped, tag = 'scratch operand']
  %s0 = inlined_call_operand.vmem [shape: f32[8,16], index: 0, kind: input, shape index: {}]
  %s1 = inlined_call_operand.hbm [shape: f32[16,128], index: 1, kind: input, shape index: {}]
  %s2 = inlined_call_operand.vmem [shape: f32[32,128], index: 2, kind: input, shape index: {}]
  %s3 = inlined_call_operand.vmem [shape: f32[1,128], index: 3, kind: input, shape index: {}]
  %s4 = inlined_call_operand.hbm [shape: f32[32,128], index: 4, kind: input, shape index: {}]
  %s5 = inlined_call_operand.hbm [shape: f32[32,128], index: 5, kind: input, shape index: {}]
  %s6 = inlined_call_operand.vmem [shape: f32[1,128], index: 6, kind: input, shape index: {}]
  %s7 = inlined_call_operand.vmem [shape: f32[2,32], index: 7, kind: input, shape index: {}]
  %s8 = inlined_call_operand.vmem [shape: f32[2,32], index: 8, kind: input, shape index: {}]
  %s9 = inlined_call_operand.vmem [shape: f32[32,8], index: 9, kind: input, shape index: {}]
  %s10 = inlined_call_operand.vmem [shape: f32[1,8], index: 10, kind: input, shape index: {}]
  %s11 = inlined_call_operand.hbm [shape: f32[8,8], index: 11, kind: output, shape index: {}]
  %s12 = sld [smem:[#allocation0]]
  $region66: #{tpu_custom_call.1} parent=0
    _
  %s14 = ssub.s32 1, %s12
  %s15 = scalar_select 0, %s14, %s12
  $region1: #{tpu_custom_call.1} parent=0
    #allocation3 [shape = 'u8[8192]{0}', space=vmem, size = 0x2000, scoped, tag = 'input window, operand 1, single buffered']
    #allocation4 [shape = 's32[1]{0}', space=sflag, size = 0x4, scoped, tag = 'scoped memory for tpu_custom_call.1']
    #allocation5 [shape = 's32[1]{0}', space=sflag, size = 0x4, scoped, tag = 'scoped memory for tpu_custom_call.1']
    #allocation6 [shape = 'u8[16384]{0}', space=vmem, size = 0x4000, scoped, tag = 'input window, operand 4, single buffered']
    #allocation7 [shape = 's32[1]{0}', space=sflag, size = 0x4, scoped, tag = 'scoped memory for tpu_custom_call.1']
    #allocation8 [shape = 'u8[16384]{0}', space=vmem, size = 0x4000, scoped, tag = 'input window, operand 5, single buffered']
    #allocation9 [shape = 'u8[4096]{0}', space=vmem, size = 0x1000, scoped, tag = 'output window, operand 0, single buffered']
    %16 = vsyncpa [#allocation4], 0
    %17 = vsyncpa [#allocation7], 0
    %18 = vsyncpa [#allocation5], 0
    // Predicated region
    $region2: #{tpu_custom_call.1} parent=1 // pred_check
      _
    $region3: #{tpu_custom_call.1} parent=1 // pred_check_branch
      %20 = sbr.rel (0) target = $region5
    $region4: #{tpu_custom_call.1} parent=1 // pred_region
      _
    $region5: #{tpu_custom_call.1} parent=1 // pred_fallthru
      _
    // Predicated region
    $region6: #{tpu_custom_call.1} parent=1 // pred_check
      _
    $region7: #{tpu_custom_call.1} parent=1 // pred_check_branch
      %22 = sbr.rel (0) target = $region9
    $region8: #{tpu_custom_call.1} parent=1 // pred_region
      %s24 = ssub.s32 256, 256
      %25 = vsyncadd [#allocation4], %s24
      %s26 = sshll.u32 [#allocation3], 4
      %s27 = int_to_ptr.vmem [resolvable:$true] %s26
      %32 = dma.hbm_to_vmem [thread:$0]  %s1, 256, %s27, [#allocation4], 128, 128, 8
    $region9: #{tpu_custom_call.1} parent=1 // pred_fallthru
      _
    // Predicated region
    $region10: #{tpu_custom_call.1} parent=1 // pred_check
      _
    $region11: #{tpu_custom_call.1} parent=1 // pred_check_branch
      %34 = sbr.rel (0) target = $region13
    $region12: #{tpu_custom_call.1} parent=1 // pred_region
      _
    $region13: #{tpu_custom_call.1} parent=1 // pred_fallthru
      _
    // Predicated region
    $region14: #{tpu_custom_call.1} parent=1 // pred_check
      _
    $region15: #{tpu_custom_call.1} parent=1 // pred_check_branch
      %36 = sbr.rel (0) target = $region17
    $region16: #{tpu_custom_call.1} parent=1 // pred_region
      _
    $region17: #{tpu_custom_call.1} parent=1 // pred_fallthru
      _
    // Predicated region
    $region18: #{tpu_custom_call.1} parent=1 // pred_check
      _
    $region19: #{tpu_custom_call.1} parent=1 // pred_check_branch
      %38 = sbr.rel (0) target = $region21
    $region20: #{tpu_custom_call.1} parent=1 // pred_region
      %s40 = ssub.s32 512, 512
      %41 = vsyncadd [#allocation7], %s40
      %s42 = sshll.u32 [#allocation6], 4
      %s43 = int_to_ptr.vmem [resolvable:$true] %s42
      %48 = dma.hbm_to_vmem [thread:$0]  %s4, 512, %s43, [#allocation7], 128, 128, 8
    $region21: #{tpu_custom_call.1} parent=1 // pred_fallthru
      _
    // Predicated region
    $region22: #{tpu_custom_call.1} parent=1 // pred_check
      _
    $region23: #{tpu_custom_call.1} parent=1 // pred_check_branch
      %50 = sbr.rel (0) target = $region25
    $region24: #{tpu_custom_call.1} parent=1 // pred_region
      %s52 = ssub.s32 512, 512
      %53 = vsyncadd [#allocation7], %s52
      %s54 = sshll.u32 [#allocation8], 4
      %s55 = int_to_ptr.vmem [resolvable:$true] %s54
      %60 = dma.hbm_to_vmem [thread:$0]  %s5, 512, %s55, [#allocation7], 128, 128, 8
    $region25: #{tpu_custom_call.1} parent=1 // pred_fallthru
      _
    // Predicated region
    $region26: #{tpu_custom_call.1} parent=1 // pred_check
      _
    $region27: #{tpu_custom_call.1} parent=1 // pred_check_branch
      %62 = sbr.rel (0) target = $region29
    $region28: #{tpu_custom_call.1} parent=1 // pred_region
      _
    $region29: #{tpu_custom_call.1} parent=1 // pred_fallthru
      _
    // Predicated region
    $region30: #{tpu_custom_call.1} parent=1 // pred_check
      _
    $region31: #{tpu_custom_call.1} parent=1 // pred_check_branch
      %64 = sbr.rel (0) target = $region33
    $region32: #{tpu_custom_call.1} parent=1 // pred_region
      _
    $region33: #{tpu_custom_call.1} parent=1 // pred_fallthru
      _
    // Predicated region
    $region34: #{tpu_custom_call.1} parent=1 // pred_check
      _
    $region35: #{tpu_custom_call.1} parent=1 // pred_check_branch
      %66 = sbr.rel (0) target = $region37
    $region36: #{tpu_custom_call.1} parent=1 // pred_region
      _
    $region37: #{tpu_custom_call.1} parent=1 // pred_fallthru
      _
    // Predicated region
    $region38: #{tpu_custom_call.1} parent=1 // pred_check
      _
    $region39: #{tpu_custom_call.1} parent=1 // pred_check_branch
      %68 = sbr.rel (0) target = $region41
    $region40: #{tpu_custom_call.1} parent=1 // pred_region
      _
    $region41: #{tpu_custom_call.1} parent=1 // pred_fallthru
      _
    // Predicated region
    $region42: #{tpu_custom_call.1} parent=1 // pred_check
      _
    $region43: #{tpu_custom_call.1} parent=1 // pred_check_branch
      %70 = sbr.rel (0) target = $region45
    $region44: #{tpu_custom_call.1} parent=1 // pred_region
      _
    $region45: #{tpu_custom_call.1} parent=1 // pred_fallthru
      _
    // Predicated region
    $region46: #{tpu_custom_call.1} parent=1 // pred_check
      _
    $region47: #{tpu_custom_call.1} parent=1 // pred_check_branch
      %72 = sbr.rel (0) target = $region49
    $region48: #{tpu_custom_call.1} parent=1 // pred_region
      %73 = dma.done [#allocation4], 256
    $region49: #{tpu_custom_call.1} parent=1 // pred_fallthru
      _
    // Predicated region
    $region50: #{tpu_custom_call.1} parent=1 // pred_check
      _
    $region51: #{tpu_custom_call.1} parent=1 // pred_check_branch
      %75 = sbr.rel (0) target = $region53
    $region52: #{tpu_custom_call.1} parent=1 // pred_region
      %76 = dma.done [#allocation7], 512
    $region53: #{tpu_custom_call.1} parent=1 // pred_fallthru
      _
    // Predicated region
    $region54: #{tpu_custom_call.1} parent=1 // pred_check
      _
    $region55: #{tpu_custom_call.1} parent=1 // pred_check_branch
      %78 = sbr.rel (0) target = $region57
    $region56: #{tpu_custom_call.1} parent=1 // pred_region
      %79 = dma.done [#allocation7], 512
    $region57: #{tpu_custom_call.1} parent=1 // pred_fallthru
      _
    %v80 = vlaneseq
    %v81 = vand.u32 %v80, 127
    %vm82 = vcmp.ge.s32.totalorder %v81, 64
    %vm83 = vcmp.lt.s32.totalorder %v81, 96
    %vm84 = vmand %vm82, %vm83
    %v85 = vsel %vm84, 1.0, 0.5
    %v86 = vsel %vm84, 0.0, 0.5
    %v87 = vld [vmem:[#allocation3] sm:$0xff]
    %v88 = vld [vmem:[#allocation3 + $0x8] sm:$0xff]
    %v89 = vld [vmem:[#allocation6] sm:$0xff]
    %v90 = vld [vmem:[#allocation6 + $0x8] sm:$0xff]
    %v91 = vld [vmem:[#allocation6 + $0x10] sm:$0xff]
    %v92 = vld [vmem:[#allocation6 + $0x18] sm:$0xff]
    %v93 = vld [vmem:[%s2] sm:$0xff]
    %v94 = vld [vmem:[%s2 + $0x8] sm:$0xff]
    %v95 = vld [vmem:[%s2 + $0x10] sm:$0xff]
    %v96 = vld [vmem:[%s2 + $0x18] sm:$0xff]
    %v97 = vld [vmem:[#allocation8] sm:$0xff]
    %v98 = vld [vmem:[#allocation8 + $0x8] sm:$0xff]
    %v99 = vld [vmem:[#allocation8 + $0x10] sm:$0xff]
    %v100 = vld [vmem:[#allocation8 + $0x18] sm:$0xff]
    %v101 = vld [vmem:[%s3] sm:$0x1]
    %v102 = vld [vmem:[%s6] sm:$0x1]
    %v103 = vld [vmem:[%s0] sm:$0xff]
    %v105 = vlaneseq
    %v106 = vshrl.u32 %v105, 7
    %v107 = vsub.s32 0, %v106
    %v108 = vrot.slane %v101, %v107
    %vm110 = vcmask 130048
    %v112 = vsel %vm110, %v103, 0
    %114 = vmatprep.subr.mxu0 0.0
    %115 = vmatpush1.msra.mxu0 0.0
    %116 = vmatprep.subr.mxu0 0.0
    %117 = vmatpush1.msra.mxu0 0.0
    %118 = vmatprep.subr.mxu0 0.0
    %119 = vmatpush1.msra.mxu0 0.0
    %120 = vmatprep.subr.mxu0 0.0
    %121 = vmatpush1.msra.mxu0 0.0
    %122 = vmatprep.subr.mxu0 0.0
    %123 = vmatpush1.msra.mxu0 0.0
    %124 = vmatprep.subr.mxu0 0.0
    %125 = vmatpush1.msra.mxu0 0.0
    %126 = vmatprep.subr.mxu0 0.0
    %127 = vmatpush1.msra.mxu0 0.0
    %128 = vmatprep.subr.mxu0 0.0
    %129 = vmatpush1.msra.mxu0 0.0
    %130 = vmatprep.subr.mxu0 0.0
    %131 = vmatpush1.msra.mxu0 0.0
    %132 = vmatprep.subr.mxu0 0.0
    %133 = vmatpush1.msra.mxu0 0.0
    %134 = vmatprep.subr.mxu0 0.0
    %135 = vmatpush1.msra.mxu0 0.0
    %136 = vmatprep.subr.mxu0 0.0
    %137 = vmatpush1.msra.mxu0 0.0
    %138 = vmatprep.subr.mxu0 0.0
    %139 = vmatpush1.msra.mxu0 0.0
    %140 = vmatprep.subr.mxu0 0.0
    %141 = vmatpush1.msra.mxu0 0.0
    %142 = vmatprep.subr.mxu0 0.0
    %143 = vmatpush1.msra.mxu0 %v88
    %144 = vmatprep.subr.mxu0 0.0
    %145 = vmatpush1.msra.mxu0 %v87
    %146 = vmatprep.subr.mxu0 0.0
    %147 = vmatpush2.msra.mxu0 0.0
    %148 = vmatprep.subr.mxu0 0.0
    %149 = vmatpush2.msra.mxu0 0.0
    %150 = vmatprep.subr.mxu0 0.0
    %151 = vmatpush2.msra.mxu0 0.0
    %152 = vmatprep.subr.mxu0 0.0
    %153 = vmatpush2.msra.mxu0 0.0
    %154 = vmatprep.subr.mxu0 0.0
    %155 = vmatpush2.msra.mxu0 0.0
    %156 = vmatprep.subr.mxu0 0.0
    %157 = vmatpush2.msra.mxu0 0.0
    %158 = vmatprep.subr.mxu0 0.0
    %159 = vmatpush2.msra.mxu0 0.0
    %160 = vmatprep.subr.mxu0 0.0
    %161 = vmatpush2.msra.mxu0 0.0
    %162 = vmatprep.subr.mxu0 0.0
    %163 = vmatpush2.msra.mxu0 0.0
    %164 = vmatprep.subr.mxu0 0.0
    %165 = vmatpush2.msra.mxu0 0.0
    %166 = vmatprep.subr.mxu0 0.0
    %167 = vmatpush2.msra.mxu0 0.0
    %168 = vmatprep.subr.mxu0 0.0
    %169 = vmatpush2.msra.mxu0 0.0
    %170 = vmatprep.subr.mxu0 0.0
    %171 = vmatpush2.msra.mxu0 0.0
    %172 = vmatprep.subr.mxu0 0.0
    %173 = vmatpush2.msra.mxu0 0.0
    %174 = vmatprep.subr.mxu0 0.0
    %175 = vmatpush2.msra.mxu0 0.0
    %176 = vmatprep.subr.mxu0 0.0
    %177 = vmatpush2.msra.mxu0 0.0
    %178 = vmatprep.mubr.f32.mxu0 0.0
    %179 = vmatmul.mubr.f32.gmra.mxu0 %v112
    %v180 = vpop.f32.mrf.mxu0
    %v181 = vadd.f32 %v108, %v180
    %v182 = vpop.f32.mrf.mxu0
    %183 = vdwg.mxu0
    %v184 = vld [vmem:[%s7] sm:$0x1]
    %v185 = vld [vmem:[%s7 + $0x1] sm:$0x1]
    %v186 = vld [vmem:[%s8] sm:$0x1]
    %v187 = vld [vmem:[%s8 + $0x1] sm:$0x1]
    %vm188 = vcmask 261120
    %v190 = vsel %vm188, %v184, 0
    %192 = vmatprep.subr.mxu0 0.0
    %193 = vmatpush1.msra.mxu0 0.0
    %194 = vmatprep.subr.mxu0 0.0
    %195 = vmatpush1.msra.mxu0 0.0
    %196 = vmatprep.subr.mxu0 0.0
    %197 = vmatpush1.msra.mxu0 0.0
    %198 = vmatprep.subr.mxu0 0.0
    %199 = vmatpush1.msra.mxu0 0.0
    %200 = vmatprep.subr.mxu0 0.0
    %201 = vmatpush1.msra.mxu0 0.0
    %202 = vmatprep.subr.mxu0 0.0
    %203 = vmatpush1.msra.mxu0 0.0
    %204 = vmatprep.subr.mxu0 0.0
    %205 = vmatpush1.msra.mxu0 0.0
    %206 = vmatprep.subr.mxu0 0.0
    %207 = vmatpush1.msra.mxu0 0.0
    %208 = vmatprep.subr.mxu0 0.0
    %209 = vmatpush1.msra.mxu0 0.0
    %210 = vmatprep.subr.mxu0 0.0
    %211 = vmatpush1.msra.mxu0 0.0
    %212 = vmatprep.subr.mxu0 0.0
    %213 = vmatpush1.msra.mxu0 0.0
    %214 = vmatprep.subr.mxu0 0.0
    %215 = vmatpush1.msra.mxu0 0.0
    %216 = vmatprep.subr.mxu0 0.0
    %217 = vmatpush1.msra.mxu0 %v96
    %218 = vmatprep.subr.mxu0 0.0
    %219 = vmatpush1.msra.mxu0 %v95
    %220 = vmatprep.subr.mxu0 0.0
    %221 = vmatpush1.msra.mxu0 %v94
    %222 = vmatprep.subr.mxu0 0.0
    %223 = vmatpush1.msra.mxu0 %v93
    %224 = vmatprep.subr.mxu0 0.0
    %225 = vmatpush2.msra.mxu0 0.0
    %226 = vmatprep.subr.mxu0 0.0
    %227 = vmatpush2.msra.mxu0 0.0
    %228 = vmatprep.subr.mxu0 0.0
    %229 = vmatpush2.msra.mxu0 0.0
    %230 = vmatprep.subr.mxu0 0.0
    %231 = vmatpush2.msra.mxu0 0.0
    %232 = vmatprep.subr.mxu0 0.0
    %233 = vmatpush2.msra.mxu0 0.0
    %234 = vmatprep.subr.mxu0 0.0
    %235 = vmatpush2.msra.mxu0 0.0
    %236 = vmatprep.subr.mxu0 0.0
    %237 = vmatpush2.msra.mxu0 0.0
    %238 = vmatprep.subr.mxu0 0.0
    %239 = vmatpush2.msra.mxu0 0.0
    %240 = vmatprep.subr.mxu0 0.0
    %241 = vmatpush2.msra.mxu0 0.0
    %242 = vmatprep.subr.mxu0 0.0
    %243 = vmatpush2.msra.mxu0 0.0
    %244 = vmatprep.subr.mxu0 0.0
    %245 = vmatpush2.msra.mxu0 0.0
    %246 = vmatprep.subr.mxu0 0.0
    %247 = vmatpush2.msra.mxu0 0.0
    %248 = vmatprep.subr.mxu0 0.0
    %249 = vmatpush2.msra.mxu0 0.0
    %250 = vmatprep.subr.mxu0 0.0
    %251 = vmatpush2.msra.mxu0 0.0
    %252 = vmatprep.subr.mxu0 0.0
    %253 = vmatpush2.msra.mxu0 0.0
    %254 = vmatprep.subr.mxu0 0.0
    %255 = vmatpush2.msra.mxu0 0.0
    %256 = vmatprep.mubr.f32.mxu0 0.0
    %257 = vmatmul.mubr.f32.gmra.mxu0 %v190
    %v258 = vpop.f32.mrf.mxu0
    %v259 = vadd.f32 0.0, %v258
    %v260 = vpop.f32.mrf.mxu0
    %261 = vdwg.mxu0
    %v262 = vadd.f32 %v181, %v259
    %v263 = vtanh.pop %v262
    %v264 = vmul.f32 %v263, %v85
    %v265 = vadd.f32 %v264, %v86
    %267 = vrot.lane.b32.xlu0 %v186, 32
    %v268 = vpop.permute.xlu0 %267
    %v270 = vmul.f32 %v265, %v268
    %272 = vrot.lane.b32.xlu0 %v265, 64
    %v273 = vpop.permute.xlu0 %272
    %v275 = vmul.f32 %v265, %v273
    %277 = vrot.lane.b32.xlu0 %v275, 32
    %v278 = vpop.permute.xlu0 %277
    %v280 = vadd.f32 %v270, %v278
    %v281 = vtanh.pop %v280
    %283 = vrot.lane.b32.xlu0 %v281, 64
    %v284 = vpop.permute.xlu0 %283
    %v286 = vmul.f32 %v265, %v284
    %v288 = vsel %vm188, %v185, 0
    %290 = vmatprep.subr.mxu0 0.0
    %291 = vmatpush1.msra.mxu0 0.0
    %292 = vmatprep.subr.mxu0 0.0
    %293 = vmatpush1.msra.mxu0 0.0
    %294 = vmatprep.subr.mxu0 0.0
    %295 = vmatpush1.msra.mxu0 0.0
    %296 = vmatprep.subr.mxu0 0.0
    %297 = vmatpush1.msra.mxu0 0.0
    %298 = vmatprep.subr.mxu0 0.0
    %299 = vmatpush1.msra.mxu0 0.0
    %300 = vmatprep.subr.mxu0 0.0
    %301 = vmatpush1.msra.mxu0 0.0
    %302 = vmatprep.subr.mxu0 0.0
    %303 = vmatpush1.msra.mxu0 0.0
    %304 = vmatprep.subr.mxu0 0.0
    %305 = vmatpush1.msra.mxu0 0.0
    %306 = vmatprep.subr.mxu0 0.0
    %307 = vmatpush1.msra.mxu0 0.0
    %308 = vmatprep.subr.mxu0 0.0
    %309 = vmatpush1.msra.mxu0 0.0
    %310 = vmatprep.subr.mxu0 0.0
    %311 = vmatpush1.msra.mxu0 0.0
    %312 = vmatprep.subr.mxu0 0.0
    %313 = vmatpush1.msra.mxu0 0.0
    %314 = vmatprep.subr.mxu0 0.0
    %315 = vmatpush1.msra.mxu0 %v100
    %316 = vmatprep.subr.mxu0 0.0
    %317 = vmatpush1.msra.mxu0 %v99
    %318 = vmatprep.subr.mxu0 0.0
    %319 = vmatpush1.msra.mxu0 %v98
    %320 = vmatprep.subr.mxu0 0.0
    %321 = vmatpush1.msra.mxu0 %v97
    %322 = vmatprep.subr.mxu0 0.0
    %323 = vmatpush2.msra.mxu0 0.0
    %324 = vmatprep.subr.mxu0 0.0
    %325 = vmatpush2.msra.mxu0 0.0
    %326 = vmatprep.subr.mxu0 0.0
    %327 = vmatpush2.msra.mxu0 0.0
    %328 = vmatprep.subr.mxu0 0.0
    %329 = vmatpush2.msra.mxu0 0.0
    %330 = vmatprep.subr.mxu0 0.0
    %331 = vmatpush2.msra.mxu0 0.0
    %332 = vmatprep.subr.mxu0 0.0
    %333 = vmatpush2.msra.mxu0 0.0
    %334 = vmatprep.subr.mxu0 0.0
    %335 = vmatpush2.msra.mxu0 0.0
    %336 = vmatprep.subr.mxu0 0.0
    %337 = vmatpush2.msra.mxu0 0.0
    %338 = vmatprep.subr.mxu0 0.0
    %339 = vmatpush2.msra.mxu0 0.0
    %340 = vmatprep.subr.mxu0 0.0
    %341 = vmatpush2.msra.mxu0 0.0
    %342 = vmatprep.subr.mxu0 0.0
    %343 = vmatpush2.msra.mxu0 0.0
    %344 = vmatprep.subr.mxu0 0.0
    %345 = vmatpush2.msra.mxu0 0.0
    %346 = vmatprep.subr.mxu0 0.0
    %347 = vmatpush2.msra.mxu0 0.0
    %348 = vmatprep.subr.mxu0 0.0
    %349 = vmatpush2.msra.mxu0 0.0
    %350 = vmatprep.subr.mxu0 0.0
    %351 = vmatpush2.msra.mxu0 0.0
    %352 = vmatprep.subr.mxu0 0.0
    %353 = vmatpush2.msra.mxu0 0.0
    %354 = vmatprep.mubr.f32.mxu0 0.0
    %355 = vmatmul.mubr.f32.gmra.mxu0 %v288
    %v356 = vpop.f32.mrf.mxu0
    %v357 = vadd.f32 0.0, %v356
    %v358 = vpop.f32.mrf.mxu0
    %359 = vdwg.mxu0
    %361 = vrot.lane.b32.xlu0 %v286, 32
    %v362 = vpop.permute.xlu0 %361
    %v363 = vsel %vm188, %v362, 0
    %365 = vmatprep.subr.mxu0 0.0
    %366 = vmatpush1.msra.mxu0 0.0
    %367 = vmatprep.subr.mxu0 0.0
    %368 = vmatpush1.msra.mxu0 0.0
    %369 = vmatprep.subr.mxu0 0.0
    %370 = vmatpush1.msra.mxu0 0.0
    %371 = vmatprep.subr.mxu0 0.0
    %372 = vmatpush1.msra.mxu0 0.0
    %373 = vmatprep.subr.mxu0 0.0
    %374 = vmatpush1.msra.mxu0 0.0
    %375 = vmatprep.subr.mxu0 0.0
    %376 = vmatpush1.msra.mxu0 0.0
    %377 = vmatprep.subr.mxu0 0.0
    %378 = vmatpush1.msra.mxu0 0.0
    %379 = vmatprep.subr.mxu0 0.0
    %380 = vmatpush1.msra.mxu0 0.0
    %381 = vmatprep.subr.mxu0 0.0
    %382 = vmatpush1.msra.mxu0 0.0
    %383 = vmatprep.subr.mxu0 0.0
    %384 = vmatpush1.msra.mxu0 0.0
    %385 = vmatprep.subr.mxu0 0.0
    %386 = vmatpush1.msra.mxu0 0.0
    %387 = vmatprep.subr.mxu0 0.0
    %388 = vmatpush1.msra.mxu0 0.0
    %389 = vmatprep.subr.mxu0 0.0
    %390 = vmatpush1.msra.mxu0 %v92
    %391 = vmatprep.subr.mxu0 0.0
    %392 = vmatpush1.msra.mxu0 %v91
    %393 = vmatprep.subr.mxu0 0.0
    %394 = vmatpush1.msra.mxu0 %v90
    %395 = vmatprep.subr.mxu0 0.0
    %396 = vmatpush1.msra.mxu0 %v89
    %397 = vmatprep.subr.mxu0 0.0
    %398 = vmatpush2.msra.mxu0 0.0
    %399 = vmatprep.subr.mxu0 0.0
    %400 = vmatpush2.msra.mxu0 0.0
    %401 = vmatprep.subr.mxu0 0.0
    %402 = vmatpush2.msra.mxu0 0.0
    %403 = vmatprep.subr.mxu0 0.0
    %404 = vmatpush2.msra.mxu0 0.0
    %405 = vmatprep.subr.mxu0 0.0
    %406 = vmatpush2.msra.mxu0 0.0
    %407 = vmatprep.subr.mxu0 0.0
    %408 = vmatpush2.msra.mxu0 0.0
    %409 = vmatprep.subr.mxu0 0.0
    %410 = vmatpush2.msra.mxu0 0.0
    %411 = vmatprep.subr.mxu0 0.0
    %412 = vmatpush2.msra.mxu0 0.0
    %413 = vmatprep.subr.mxu0 0.0
    %414 = vmatpush2.msra.mxu0 0.0
    %415 = vmatprep.subr.mxu0 0.0
    %416 = vmatpush2.msra.mxu0 0.0
    %417 = vmatprep.subr.mxu0 0.0
    %418 = vmatpush2.msra.mxu0 0.0
    %419 = vmatprep.subr.mxu0 0.0
    %420 = vmatpush2.msra.mxu0 0.0
    %421 = vmatprep.subr.mxu0 0.0
    %422 = vmatpush2.msra.mxu0 0.0
    %423 = vmatprep.subr.mxu0 0.0
    %424 = vmatpush2.msra.mxu0 0.0
    %425 = vmatprep.subr.mxu0 0.0
    %426 = vmatpush2.msra.mxu0 0.0
    %427 = vmatprep.subr.mxu0 0.0
    %428 = vmatpush2.msra.mxu0 0.0
    %429 = vmatprep.mubr.f32.mxu0 0.0
    %430 = vmatmul.mubr.f32.gmra.mxu0 %v363
    %v431 = vpop.f32.mrf.mxu0
    %v432 = vadd.f32 %v357, %v431
    %v433 = vpop.f32.mrf.mxu0
    %434 = vdwg.mxu0
    %v435 = vadd.f32 %v432, %v102
    %v436 = vtanh.pop %v435
    %v437 = vmul.f32 %v436, %v85
    %v438 = vadd.f32 %v437, %v86
    %440 = vrot.lane.b32.xlu0 %v187, 32
    %v441 = vpop.permute.xlu0 %440
    %v443 = vmul.f32 %v438, %v441
    %445 = vrot.lane.b32.xlu0 %v438, 64
    %v446 = vpop.permute.xlu0 %445
    %v448 = vmul.f32 %v438, %v446
    %450 = vrot.lane.b32.xlu0 %v448, 32
    %v451 = vpop.permute.xlu0 %450
    %v453 = vadd.f32 %v443, %v451
    %v454 = vtanh.pop %v453
    %456 = vrot.lane.b32.xlu0 %v454, 64
    %v457 = vpop.permute.xlu0 %456
    %v459 = vmul.f32 %v438, %v457
    %461 = vrot.lane.b32.xlu0 %v459, 32
    %v462 = vpop.permute.xlu0 %461
    %vm464 = vcmask 253952
    %465 = vst.msk [vmem:[#allocation2] sm:$0x1] %vm464, %v462
    %466 = vmatprep.subr.mxu0 0.0
    %467 = vmatpush1.msra.mxu0 0.0
    %468 = vmatprep.subr.mxu0 0.0
    %469 = vmatpush1.msra.mxu0 0.0
    %470 = vmatprep.subr.mxu0 0.0
    %471 = vmatpush1.msra.mxu0 0.0
    %472 = vmatprep.subr.mxu0 0.0
    %473 = vmatpush1.msra.mxu0 0.0
    %474 = vmatprep.subr.mxu0 0.0
    %475 = vmatpush1.msra.mxu0 0.0
    %476 = vmatprep.subr.mxu0 0.0
    %477 = vmatpush1.msra.mxu0 0.0
    %478 = vmatprep.subr.mxu0 0.0
    %479 = vmatpush1.msra.mxu0 0.0
    %480 = vmatprep.subr.mxu0 0.0
    %481 = vmatpush1.msra.mxu0 0.0
    %482 = vmatprep.subr.mxu0 0.0
    %483 = vmatpush1.msra.mxu0 0.0
    %484 = vmatprep.subr.mxu0 0.0
    %485 = vmatpush1.msra.mxu0 0.0
    %486 = vmatprep.subr.mxu0 0.0
    %487 = vmatpush1.msra.mxu0 0.0
    %488 = vmatprep.subr.mxu0 0.0
    %489 = vmatpush1.msra.mxu0 0.0
    %490 = vmatprep.subr.mxu0 0.0
    %491 = vmatpush1.msra.mxu0 %v96
    %492 = vmatprep.subr.mxu0 0.0
    %493 = vmatpush1.msra.mxu0 %v95
    %494 = vmatprep.subr.mxu0 0.0
    %495 = vmatpush1.msra.mxu0 %v94
    %496 = vmatprep.subr.mxu0 0.0
    %497 = vmatpush1.msra.mxu0 %v93
    %498 = vmatprep.subr.mxu0 0.0
    %499 = vmatpush2.msra.mxu0 0.0
    %500 = vmatprep.subr.mxu0 0.0
    %501 = vmatpush2.msra.mxu0 0.0
    %502 = vmatprep.subr.mxu0 0.0
    %503 = vmatpush2.msra.mxu0 0.0
    %504 = vmatprep.subr.mxu0 0.0
    %505 = vmatpush2.msra.mxu0 0.0
    %506 = vmatprep.subr.mxu0 0.0
    %507 = vmatpush2.msra.mxu0 0.0
    %508 = vmatprep.subr.mxu0 0.0
    %509 = vmatpush2.msra.mxu0 0.0
    %510 = vmatprep.subr.mxu0 0.0
    %511 = vmatpush2.msra.mxu0 0.0
    %512 = vmatprep.subr.mxu0 0.0
    %513 = vmatpush2.msra.mxu0 0.0
    %514 = vmatprep.subr.mxu0 0.0
    %515 = vmatpush2.msra.mxu0 0.0
    %516 = vmatprep.subr.mxu0 0.0
    %517 = vmatpush2.msra.mxu0 0.0
    %518 = vmatprep.subr.mxu0 0.0
    %519 = vmatpush2.msra.mxu0 0.0
    %520 = vmatprep.subr.mxu0 0.0
    %521 = vmatpush2.msra.mxu0 0.0
    %522 = vmatprep.subr.mxu0 0.0
    %523 = vmatpush2.msra.mxu0 0.0
    %524 = vmatprep.subr.mxu0 0.0
    %525 = vmatpush2.msra.mxu0 0.0
    %526 = vmatprep.subr.mxu0 0.0
    %527 = vmatpush2.msra.mxu0 0.0
    %528 = vmatprep.subr.mxu0 0.0
    %529 = vmatpush2.msra.mxu0 0.0
    %530 = vmatprep.mubr.f32.mxu0 0.0
    %531 = vmatmul.mubr.f32.gmra.mxu0 %v363
    %v532 = vpop.f32.mrf.mxu0
    %v533 = vadd.f32 0.0, %v532
    %v534 = vpop.f32.mrf.mxu0
    %535 = vdwg.mxu0
    %v537 = vrot.slane %v533, 7
    %v539 = vadd.f32 %v181, %v537
    %v540 = vtanh.pop %v539
    %v541 = vmul.f32 %v540, %v85
    %v542 = vadd.f32 %v541, %v86
    %v544 = vrot.slane %v280, 7
    %v546 = vmul.f32 %v542, %v544
    %548 = vrot.lane.b32.xlu0 %v542, 64
    %v549 = vpop.permute.xlu0 %548
    %v551 = vmul.f32 %v542, %v549
    %553 = vrot.lane.b32.xlu0 %v551, 32
    %v554 = vpop.permute.xlu0 %553
    %v556 = vadd.f32 %v546, %v554
    %v557 = vtanh.pop %v556
    %559 = vrot.lane.b32.xlu0 %v557, 64
    %v560 = vpop.permute.xlu0 %559
    %v562 = vmul.f32 %v542, %v560
    %v563 = vsel %vm188, %v462, 0
    %565 = vmatprep.subr.mxu0 0.0
    %566 = vmatpush1.msra.mxu0 0.0
    %567 = vmatprep.subr.mxu0 0.0
    %568 = vmatpush1.msra.mxu0 0.0
    %569 = vmatprep.subr.mxu0 0.0
    %570 = vmatpush1.msra.mxu0 0.0
    %571 = vmatprep.subr.mxu0 0.0
    %572 = vmatpush1.msra.mxu0 0.0
    %573 = vmatprep.subr.mxu0 0.0
    %574 = vmatpush1.msra.mxu0 0.0
    %575 = vmatprep.subr.mxu0 0.0
    %576 = vmatpush1.msra.mxu0 0.0
    %577 = vmatprep.subr.mxu0 0.0
    %578 = vmatpush1.msra.mxu0 0.0
    %579 = vmatprep.subr.mxu0 0.0
    %580 = vmatpush1.msra.mxu0 0.0
    %581 = vmatprep.subr.mxu0 0.0
    %582 = vmatpush1.msra.mxu0 0.0
    %583 = vmatprep.subr.mxu0 0.0
    %584 = vmatpush1.msra.mxu0 0.0
    %585 = vmatprep.subr.mxu0 0.0
    %586 = vmatpush1.msra.mxu0 0.0
    %587 = vmatprep.subr.mxu0 0.0
    %588 = vmatpush1.msra.mxu0 0.0
    %589 = vmatprep.subr.mxu0 0.0
    %590 = vmatpush1.msra.mxu0 %v100
    %591 = vmatprep.subr.mxu0 0.0
    %592 = vmatpush1.msra.mxu0 %v99
    %593 = vmatprep.subr.mxu0 0.0
    %594 = vmatpush1.msra.mxu0 %v98
    %595 = vmatprep.subr.mxu0 0.0
    %596 = vmatpush1.msra.mxu0 %v97
    %597 = vmatprep.subr.mxu0 0.0
    %598 = vmatpush2.msra.mxu0 0.0
    %599 = vmatprep.subr.mxu0 0.0
    %600 = vmatpush2.msra.mxu0 0.0
    %601 = vmatprep.subr.mxu0 0.0
    %602 = vmatpush2.msra.mxu0 0.0
    %603 = vmatprep.subr.mxu0 0.0
    %604 = vmatpush2.msra.mxu0 0.0
    %605 = vmatprep.subr.mxu0 0.0
    %606 = vmatpush2.msra.mxu0 0.0
    %607 = vmatprep.subr.mxu0 0.0
    %608 = vmatpush2.msra.mxu0 0.0
    %609 = vmatprep.subr.mxu0 0.0
    %610 = vmatpush2.msra.mxu0 0.0
    %611 = vmatprep.subr.mxu0 0.0
    %612 = vmatpush2.msra.mxu0 0.0
    %613 = vmatprep.subr.mxu0 0.0
    %614 = vmatpush2.msra.mxu0 0.0
    %615 = vmatprep.subr.mxu0 0.0
    %616 = vmatpush2.msra.mxu0 0.0
    %617 = vmatprep.subr.mxu0 0.0
    %618 = vmatpush2.msra.mxu0 0.0
    %619 = vmatprep.subr.mxu0 0.0
    %620 = vmatpush2.msra.mxu0 0.0
    %621 = vmatprep.subr.mxu0 0.0
    %622 = vmatpush2.msra.mxu0 0.0
    %623 = vmatprep.subr.mxu0 0.0
    %624 = vmatpush2.msra.mxu0 0.0
    %625 = vmatprep.subr.mxu0 0.0
    %626 = vmatpush2.msra.mxu0 0.0
    %627 = vmatprep.subr.mxu0 0.0
    %628 = vmatpush2.msra.mxu0 0.0
    %629 = vmatprep.mubr.f32.mxu0 0.0
    %630 = vmatmul.mubr.f32.gmra.mxu0 %v563
    %v631 = vpop.f32.mrf.mxu0
    %v632 = vadd.f32 0.0, %v631
    %v633 = vpop.f32.mrf.mxu0
    %634 = vdwg.mxu0
    %v636 = vrot.slane %v562, 1
    %637 = vrot.lane.b32.xlu0 %v636, 32
    %v638 = vpop.permute.xlu0 %637
    %v639 = vsel %vm188, %v638, 0
    %641 = vmatprep.subr.mxu0 0.0
    %642 = vmatpush1.msra.mxu0 0.0
    %643 = vmatprep.subr.mxu0 0.0
    %644 = vmatpush1.msra.mxu0 0.0
    %645 = vmatprep.subr.mxu0 0.0
    %646 = vmatpush1.msra.mxu0 0.0
    %647 = vmatprep.subr.mxu0 0.0
    %648 = vmatpush1.msra.mxu0 0.0
    %649 = vmatprep.subr.mxu0 0.0
    %650 = vmatpush1.msra.mxu0 0.0
    %651 = vmatprep.subr.mxu0 0.0
    %652 = vmatpush1.msra.mxu0 0.0
    %653 = vmatprep.subr.mxu0 0.0
    %654 = vmatpush1.msra.mxu0 0.0
    %655 = vmatprep.subr.mxu0 0.0
    %656 = vmatpush1.msra.mxu0 0.0
    %657 = vmatprep.subr.mxu0 0.0
    %658 = vmatpush1.msra.mxu0 0.0
    %659 = vmatprep.subr.mxu0 0.0
    %660 = vmatpush1.msra.mxu0 0.0
    %661 = vmatprep.subr.mxu0 0.0
    %662 = vmatpush1.msra.mxu0 0.0
    %663 = vmatprep.subr.mxu0 0.0
    %664 = vmatpush1.msra.mxu0 0.0
    %665 = vmatprep.subr.mxu0 0.0
    %666 = vmatpush1.msra.mxu0 %v92
    %667 = vmatprep.subr.mxu0 0.0
    %668 = vmatpush1.msra.mxu0 %v91
    %669 = vmatprep.subr.mxu0 0.0
    %670 = vmatpush1.msra.mxu0 %v90
    %671 = vmatprep.subr.mxu0 0.0
    %672 = vmatpush1.msra.mxu0 %v89
    %673 = vmatprep.subr.mxu0 0.0
    %674 = vmatpush2.msra.mxu0 0.0
    %675 = vmatprep.subr.mxu0 0.0
    %676 = vmatpush2.msra.mxu0 0.0
    %677 = vmatprep.subr.mxu0 0.0
    %678 = vmatpush2.msra.mxu0 0.0
    %679 = vmatprep.subr.mxu0 0.0
    %680 = vmatpush2.msra.mxu0 0.0
    %681 = vmatprep.subr.mxu0 0.0
    %682 = vmatpush2.msra.mxu0 0.0
    %683 = vmatprep.subr.mxu0 0.0
    %684 = vmatpush2.msra.mxu0 0.0
    %685 = vmatprep.subr.mxu0 0.0
    %686 = vmatpush2.msra.mxu0 0.0
    %687 = vmatprep.subr.mxu0 0.0
    %688 = vmatpush2.msra.mxu0 0.0
    %689 = vmatprep.subr.mxu0 0.0
    %690 = vmatpush2.msra.mxu0 0.0
    %691 = vmatprep.subr.mxu0 0.0
    %692 = vmatpush2.msra.mxu0 0.0
    %693 = vmatprep.subr.mxu0 0.0
    %694 = vmatpush2.msra.mxu0 0.0
    %695 = vmatprep.subr.mxu0 0.0
    %696 = vmatpush2.msra.mxu0 0.0
    %697 = vmatprep.subr.mxu0 0.0
    %698 = vmatpush2.msra.mxu0 0.0
    %699 = vmatprep.subr.mxu0 0.0
    %700 = vmatpush2.msra.mxu0 0.0
    %701 = vmatprep.subr.mxu0 0.0
    %702 = vmatpush2.msra.mxu0 0.0
    %703 = vmatprep.subr.mxu0 0.0
    %704 = vmatpush2.msra.mxu0 0.0
    %705 = vmatprep.mubr.f32.mxu0 0.0
    %706 = vmatmul.mubr.f32.gmra.mxu0 %v639
    %v707 = vpop.f32.mrf.mxu0
    %v708 = vadd.f32 %v632, %v707
    %v709 = vpop.f32.mrf.mxu0
    %710 = vdwg.mxu0
    %v711 = vadd.f32 %v708, %v102
    %v712 = vtanh.pop %v711
    %v713 = vmul.f32 %v712, %v85
    %v714 = vadd.f32 %v713, %v86
    %v715 = vmul.f32 %v714, %v453
    %717 = vrot.lane.b32.xlu0 %v714, 64
    %v718 = vpop.permute.xlu0 %717
    %v720 = vmul.f32 %v714, %v718
    %722 = vrot.lane.b32.xlu0 %v720, 32
    %v723 = vpop.permute.xlu0 %722
    %v725 = vadd.f32 %v715, %v723
    %v726 = vtanh.pop %v725
    %728 = vrot.lane.b32.xlu0 %v726, 64
    %v729 = vpop.permute.xlu0 %728
    %v731 = vmul.f32 %v714, %v729
    %733 = vrot.lane.b32.xlu0 %v731, 32
    %v734 = vpop.permute.xlu0 %733
    %736 = vst.msk [vmem:[#allocation2 + $0x1] sm:$0x1] %vm464, %v734
    %737 = vmatprep.subr.mxu0 0.0
    %738 = vmatpush1.msra.mxu0 0.0
    %739 = vmatprep.subr.mxu0 0.0
    %740 = vmatpush1.msra.mxu0 0.0
    %741 = vmatprep.subr.mxu0 0.0
    %742 = vmatpush1.msra.mxu0 0.0
    %743 = vmatprep.subr.mxu0 0.0
    %744 = vmatpush1.msra.mxu0 0.0
    %745 = vmatprep.subr.mxu0 0.0
    %746 = vmatpush1.msra.mxu0 0.0
    %747 = vmatprep.subr.mxu0 0.0
    %748 = vmatpush1.msra.mxu0 0.0
    %749 = vmatprep.subr.mxu0 0.0
    %750 = vmatpush1.msra.mxu0 0.0
    %751 = vmatprep.subr.mxu0 0.0
    %752 = vmatpush1.msra.mxu0 0.0
    %753 = vmatprep.subr.mxu0 0.0
    %754 = vmatpush1.msra.mxu0 0.0
    %755 = vmatprep.subr.mxu0 0.0
    %756 = vmatpush1.msra.mxu0 0.0
    %757 = vmatprep.subr.mxu0 0.0
    %758 = vmatpush1.msra.mxu0 0.0
    %759 = vmatprep.subr.mxu0 0.0
    %760 = vmatpush1.msra.mxu0 0.0
    %761 = vmatprep.subr.mxu0 0.0
    %762 = vmatpush1.msra.mxu0 %v96
    %763 = vmatprep.subr.mxu0 0.0
    %764 = vmatpush1.msra.mxu0 %v95
    %765 = vmatprep.subr.mxu0 0.0
    %766 = vmatpush1.msra.mxu0 %v94
    %767 = vmatprep.subr.mxu0 0.0
    %768 = vmatpush1.msra.mxu0 %v93
    %769 = vmatprep.subr.mxu0 0.0
    %770 = vmatpush2.msra.mxu0 0.0
    %771 = vmatprep.subr.mxu0 0.0
    %772 = vmatpush2.msra.mxu0 0.0
    %773 = vmatprep.subr.mxu0 0.0
    %774 = vmatpush2.msra.mxu0 0.0
    %775 = vmatprep.subr.mxu0 0.0
    %776 = vmatpush2.msra.mxu0 0.0
    %777 = vmatprep.subr.mxu0 0.0
    %778 = vmatpush2.msra.mxu0 0.0
    %779 = vmatprep.subr.mxu0 0.0
    %780 = vmatpush2.msra.mxu0 0.0
    %781 = vmatprep.subr.mxu0 0.0
    %782 = vmatpush2.msra.mxu0 0.0
    %783 = vmatprep.subr.mxu0 0.0
    %784 = vmatpush2.msra.mxu0 0.0
    %785 = vmatprep.subr.mxu0 0.0
    %786 = vmatpush2.msra.mxu0 0.0
    %787 = vmatprep.subr.mxu0 0.0
    %788 = vmatpush2.msra.mxu0 0.0
    %789 = vmatprep.subr.mxu0 0.0
    %790 = vmatpush2.msra.mxu0 0.0
    %791 = vmatprep.subr.mxu0 0.0
    %792 = vmatpush2.msra.mxu0 0.0
    %793 = vmatprep.subr.mxu0 0.0
    %794 = vmatpush2.msra.mxu0 0.0
    %795 = vmatprep.subr.mxu0 0.0
    %796 = vmatpush2.msra.mxu0 0.0
    %797 = vmatprep.subr.mxu0 0.0
    %798 = vmatpush2.msra.mxu0 0.0
    %799 = vmatprep.subr.mxu0 0.0
    %800 = vmatpush2.msra.mxu0 0.0
    %801 = vmatprep.mubr.f32.mxu0 0.0
    %802 = vmatmul.mubr.f32.gmra.mxu0 %v639
    %v803 = vpop.f32.mrf.mxu0
    %v804 = vadd.f32 0.0, %v803
    %v805 = vpop.f32.mrf.mxu0
    %806 = vdwg.mxu0
    %v808 = vrot.slane %v804, 6
    %v810 = vadd.f32 %v181, %v808
    %v811 = vtanh.pop %v810
    %v812 = vmul.f32 %v811, %v85
    %v813 = vadd.f32 %v812, %v86
    %v815 = vrot.slane %v556, 7
    %v817 = vmul.f32 %v813, %v815
    %819 = vrot.lane.b32.xlu0 %v813, 64
    %v820 = vpop.permute.xlu0 %819
    %v822 = vmul.f32 %v813, %v820
    %824 = vrot.lane.b32.xlu0 %v822, 32
    %v825 = vpop.permute.xlu0 %824
    %v827 = vadd.f32 %v817, %v825
    %v828 = vtanh.pop %v827
    %830 = vrot.lane.b32.xlu0 %v828, 64
    %v831 = vpop.permute.xlu0 %830
    %v833 = vmul.f32 %v813, %v831
    %v834 = vsel %vm188, %v734, 0
    %836 = vmatprep.subr.mxu0 0.0
    %837 = vmatpush1.msra.mxu0 0.0
    %838 = vmatprep.subr.mxu0 0.0
    %839 = vmatpush1.msra.mxu0 0.0
    %840 = vmatprep.subr.mxu0 0.0
    %841 = vmatpush1.msra.mxu0 0.0
    %842 = vmatprep.subr.mxu0 0.0
    %843 = vmatpush1.msra.mxu0 0.0
    %844 = vmatprep.subr.mxu0 0.0
    %845 = vmatpush1.msra.mxu0 0.0
    %846 = vmatprep.subr.mxu0 0.0
    %847 = vmatpush1.msra.mxu0 0.0
    %848 = vmatprep.subr.mxu0 0.0
    %849 = vmatpush1.msra.mxu0 0.0
    %850 = vmatprep.subr.mxu0 0.0
    %851 = vmatpush1.msra.mxu0 0.0
    %852 = vmatprep.subr.mxu0 0.0
    %853 = vmatpush1.msra.mxu0 0.0
    %854 = vmatprep.subr.mxu0 0.0
    %855 = vmatpush1.msra.mxu0 0.0
    %856 = vmatprep.subr.mxu0 0.0
    %857 = vmatpush1.msra.mxu0 0.0
    %858 = vmatprep.subr.mxu0 0.0
    %859 = vmatpush1.msra.mxu0 0.0
    %860 = vmatprep.subr.mxu0 0.0
    %861 = vmatpush1.msra.mxu0 %v100
    %862 = vmatprep.subr.mxu0 0.0
    %863 = vmatpush1.msra.mxu0 %v99
    %864 = vmatprep.subr.mxu0 0.0
    %865 = vmatpush1.msra.mxu0 %v98
    %866 = vmatprep.subr.mxu0 0.0
    %867 = vmatpush1.msra.mxu0 %v97
    %868 = vmatprep.subr.mxu0 0.0
    %869 = vmatpush2.msra.mxu0 0.0
    %870 = vmatprep.subr.mxu0 0.0
    %871 = vmatpush2.msra.mxu0 0.0
    %872 = vmatprep.subr.mxu0 0.0
    %873 = vmatpush2.msra.mxu0 0.0
    %874 = vmatprep.subr.mxu0 0.0
    %875 = vmatpush2.msra.mxu0 0.0
    %876 = vmatprep.subr.mxu0 0.0
    %877 = vmatpush2.msra.mxu0 0.0
    %878 = vmatprep.subr.mxu0 0.0
    %879 = vmatpush2.msra.mxu0 0.0
    %880 = vmatprep.subr.mxu0 0.0
    %881 = vmatpush2.msra.mxu0 0.0
    %882 = vmatprep.subr.mxu0 0.0
    %883 = vmatpush2.msra.mxu0 0.0
    %884 = vmatprep.subr.mxu0 0.0
    %885 = vmatpush2.msra.mxu0 0.0
    %886 = vmatprep.subr.mxu0 0.0
    %887 = vmatpush2.msra.mxu0 0.0
    %888 = vmatprep.subr.mxu0 0.0
    %889 = vmatpush2.msra.mxu0 0.0
    %890 = vmatprep.subr.mxu0 0.0
    %891 = vmatpush2.msra.mxu0 0.0
    %892 = vmatprep.subr.mxu0 0.0
    %893 = vmatpush2.msra.mxu0 0.0
    %894 = vmatprep.subr.mxu0 0.0
    %895 = vmatpush2.msra.mxu0 0.0
    %896 = vmatprep.subr.mxu0 0.0
    %897 = vmatpush2.msra.mxu0 0.0
    %898 = vmatprep.subr.mxu0 0.0
    %899 = vmatpush2.msra.mxu0 0.0
    %900 = vmatprep.mubr.f32.mxu0 0.0
    %901 = vmatmul.mubr.f32.gmra.mxu0 %v834
    %v902 = vpop.f32.mrf.mxu0
    %v903 = vadd.f32 0.0, %v902
    %v904 = vpop.f32.mrf.mxu0
    %905 = vdwg.mxu0
    %v907 = vrot.slane %v833, 2
    %908 = vrot.lane.b32.xlu0 %v907, 32
    %v909 = vpop.permute.xlu0 %908
    %v910 = vsel %vm188, %v909, 0
    %912 = vmatprep.subr.mxu0 0.0
    %913 = vmatpush1.msra.mxu0 0.0
    %914 = vmatprep.subr.mxu0 0.0
    %915 = vmatpush1.msra.mxu0 0.0
    %916 = vmatprep.subr.mxu0 0.0
    %917 = vmatpush1.msra.mxu0 0.0
    %918 = vmatprep.subr.mxu0 0.0
    %919 = vmatpush1.msra.mxu0 0.0
    %920 = vmatprep.subr.mxu0 0.0
    %921 = vmatpush1.msra.mxu0 0.0
    %922 = vmatprep.subr.mxu0 0.0
    %923 = vmatpush1.msra.mxu0 0.0
    %924 = vmatprep.subr.mxu0 0.0
    %925 = vmatpush1.msra.mxu0 0.0
    %926 = vmatprep.subr.mxu0 0.0
    %927 = vmatpush1.msra.mxu0 0.0
    %928 = vmatprep.subr.mxu0 0.0
    %929 = vmatpush1.msra.mxu0 0.0
    %930 = vmatprep.subr.mxu0 0.0
    %931 = vmatpush1.msra.mxu0 0.0
    %932 = vmatprep.subr.mxu0 0.0
    %933 = vmatpush1.msra.mxu0 0.0
    %934 = vmatprep.subr.mxu0 0.0
    %935 = vmatpush1.msra.mxu0 0.0
    %936 = vmatprep.subr.mxu0 0.0
    %937 = vmatpush1.msra.mxu0 %v92
    %938 = vmatprep.subr.mxu0 0.0
    %939 = vmatpush1.msra.mxu0 %v91
    %940 = vmatprep.subr.mxu0 0.0
    %941 = vmatpush1.msra.mxu0 %v90
    %942 = vmatprep.subr.mxu0 0.0
    %943 = vmatpush1.msra.mxu0 %v89
    %944 = vmatprep.subr.mxu0 0.0
    %945 = vmatpush2.msra.mxu0 0.0
    %946 = vmatprep.subr.mxu0 0.0
    %947 = vmatpush2.msra.mxu0 0.0
    %948 = vmatprep.subr.mxu0 0.0
    %949 = vmatpush2.msra.mxu0 0.0
    %950 = vmatprep.subr.mxu0 0.0
    %951 = vmatpush2.msra.mxu0 0.0
    %952 = vmatprep.subr.mxu0 0.0
    %953 = vmatpush2.msra.mxu0 0.0
    %954 = vmatprep.subr.mxu0 0.0
    %955 = vmatpush2.msra.mxu0 0.0
    %956 = vmatprep.subr.mxu0 0.0
    %957 = vmatpush2.msra.mxu0 0.0
    %958 = vmatprep.subr.mxu0 0.0
    %959 = vmatpush2.msra.mxu0 0.0
    %960 = vmatprep.subr.mxu0 0.0
    %961 = vmatpush2.msra.mxu0 0.0
    %962 = vmatprep.subr.mxu0 0.0
    %963 = vmatpush2.msra.mxu0 0.0
    %964 = vmatprep.subr.mxu0 0.0
    %965 = vmatpush2.msra.mxu0 0.0
    %966 = vmatprep.subr.mxu0 0.0
    %967 = vmatpush2.msra.mxu0 0.0
    %968 = vmatprep.subr.mxu0 0.0
    %969 = vmatpush2.msra.mxu0 0.0
    %970 = vmatprep.subr.mxu0 0.0
    %971 = vmatpush2.msra.mxu0 0.0
    %972 = vmatprep.subr.mxu0 0.0
    %973 = vmatpush2.msra.mxu0 0.0
    %974 = vmatprep.subr.mxu0 0.0
    %975 = vmatpush2.msra.mxu0 0.0
    %976 = vmatprep.mubr.f32.mxu0 0.0
    %977 = vmatmul.mubr.f32.gmra.mxu0 %v910
    %v978 = vpop.f32.mrf.mxu0
    %v979 = vadd.f32 %v903, %v978
    %v980 = vpop.f32.mrf.mxu0
    %981 = vdwg.mxu0
    %v982 = vadd.f32 %v979, %v102
    %v983 = vtanh.pop %v982
    %v984 = vmul.f32 %v983, %v85
    %v985 = vadd.f32 %v984, %v86
    %v986 = vmul.f32 %v985, %v725
    %988 = vrot.lane.b32.xlu0 %v985, 64
    %v989 = vpop.permute.xlu0 %988
    %v991 = vmul.f32 %v985, %v989
    %993 = vrot.lane.b32.xlu0 %v991, 32
    %v994 = vpop.permute.xlu0 %993
    %v996 = vadd.f32 %v986, %v994
    %v997 = vtanh.pop %v996
    %999 = vrot.lane.b32.xlu0 %v997, 64
    %v1000 = vpop.permute.xlu0 %999
    %v1002 = vmul.f32 %v985, %v1000
    %1004 = vrot.lane.b32.xlu0 %v1002, 32
    %v1005 = vpop.permute.xlu0 %1004
    %1007 = vst.msk [vmem:[#allocation2 + $0x2] sm:$0x1] %vm464, %v1005
    %1008 = vmatprep.subr.mxu0 0.0
    %1009 = vmatpush1.msra.mxu0 0.0
    %1010 = vmatprep.subr.mxu0 0.0
    %1011 = vmatpush1.msra.mxu0 0.0
    %1012 = vmatprep.subr.mxu0 0.0
    %1013 = vmatpush1.msra.mxu0 0.0
    %1014 = vmatprep.subr.mxu0 0.0
    %1015 = vmatpush1.msra.mxu0 0.0
    %1016 = vmatprep.subr.mxu0 0.0
    %1017 = vmatpush1.msra.mxu0 0.0
    %1018 = vmatprep.subr.mxu0 0.0
    %1019 = vmatpush1.msra.mxu0 0.0
    %1020 = vmatprep.subr.mxu0 0.0
    %1021 = vmatpush1.msra.mxu0 0.0
    %1022 = vmatprep.subr.mxu0 0.0
    %1023 = vmatpush1.msra.mxu0 0.0
    %1024 = vmatprep.subr.mxu0 0.0
    %1025 = vmatpush1.msra.mxu0 0.0
    %1026 = vmatprep.subr.mxu0 0.0
    %1027 = vmatpush1.msra.mxu0 0.0
    %1028 = vmatprep.subr.mxu0 0.0
    %1029 = vmatpush1.msra.mxu0 0.0
    %1030 = vmatprep.subr.mxu0 0.0
    %1031 = vmatpush1.msra.mxu0 0.0
    %1032 = vmatprep.subr.mxu0 0.0
    %1033 = vmatpush1.msra.mxu0 %v96
    %1034 = vmatprep.subr.mxu0 0.0
    %1035 = vmatpush1.msra.mxu0 %v95
    %1036 = vmatprep.subr.mxu0 0.0
    %1037 = vmatpush1.msra.mxu0 %v94
    %1038 = vmatprep.subr.mxu0 0.0
    %1039 = vmatpush1.msra.mxu0 %v93
    %1040 = vmatprep.subr.mxu0 0.0
    %1041 = vmatpush2.msra.mxu0 0.0
    %1042 = vmatprep.subr.mxu0 0.0
    %1043 = vmatpush2.msra.mxu0 0.0
    %1044 = vmatprep.subr.mxu0 0.0
    %1045 = vmatpush2.msra.mxu0 0.0
    %1046 = vmatprep.subr.mxu0 0.0
    %1047 = vmatpush2.msra.mxu0 0.0
    %1048 = vmatprep.subr.mxu0 0.0
    %1049 = vmatpush2.msra.mxu0 0.0
    %1050 = vmatprep.subr.mxu0 0.0
    %1051 = vmatpush2.msra.mxu0 0.0
    %1052 = vmatprep.subr.mxu0 0.0
    %1053 = vmatpush2.msra.mxu0 0.0
    %1054 = vmatprep.subr.mxu0 0.0
    %1055 = vmatpush2.msra.mxu0 0.0
    %1056 = vmatprep.subr.mxu0 0.0
    %1057 = vmatpush2.msra.mxu0 0.0
    %1058 = vmatprep.subr.mxu0 0.0
    %1059 = vmatpush2.msra.mxu0 0.0
    %1060 = vmatprep.subr.mxu0 0.0
    %1061 = vmatpush2.msra.mxu0 0.0
    %1062 = vmatprep.subr.mxu0 0.0
    %1063 = vmatpush2.msra.mxu0 0.0
    %1064 = vmatprep.subr.mxu0 0.0
    %1065 = vmatpush2.msra.mxu0 0.0
    %1066 = vmatprep.subr.mxu0 0.0
    %1067 = vmatpush2.msra.mxu0 0.0
    %1068 = vmatprep.subr.mxu0 0.0
    %1069 = vmatpush2.msra.mxu0 0.0
    %1070 = vmatprep.subr.mxu0 0.0
    %1071 = vmatpush2.msra.mxu0 0.0
    %1072 = vmatprep.mubr.f32.mxu0 0.0
    %1073 = vmatmul.mubr.f32.gmra.mxu0 %v910
    %v1074 = vpop.f32.mrf.mxu0
    %v1075 = vadd.f32 0.0, %v1074
    %v1076 = vpop.f32.mrf.mxu0
    %1077 = vdwg.mxu0
    %v1079 = vrot.slane %v1075, 5
    %v1081 = vadd.f32 %v181, %v1079
    %v1082 = vtanh.pop %v1081
    %v1083 = vmul.f32 %v1082, %v85
    %v1084 = vadd.f32 %v1083, %v86
    %v1086 = vrot.slane %v827, 7
    %v1088 = vmul.f32 %v1084, %v1086
    %1090 = vrot.lane.b32.xlu0 %v1084, 64
    %v1091 = vpop.permute.xlu0 %1090
    %v1093 = vmul.f32 %v1084, %v1091
    %1095 = vrot.lane.b32.xlu0 %v1093, 32
    %v1096 = vpop.permute.xlu0 %1095
    %v1098 = vadd.f32 %v1088, %v1096
    %v1099 = vtanh.pop %v1098
    %1101 = vrot.lane.b32.xlu0 %v1099, 64
    %v1102 = vpop.permute.xlu0 %1101
    %v1104 = vmul.f32 %v1084, %v1102
    %v1105 = vsel %vm188, %v1005, 0
    %1107 = vmatprep.subr.mxu0 0.0
    %1108 = vmatpush1.msra.mxu0 0.0
    %1109 = vmatprep.subr.mxu0 0.0
    %1110 = vmatpush1.msra.mxu0 0.0
    %1111 = vmatprep.subr.mxu0 0.0
    %1112 = vmatpush1.msra.mxu0 0.0
    %1113 = vmatprep.subr.mxu0 0.0
    %1114 = vmatpush1.msra.mxu0 0.0
    %1115 = vmatprep.subr.mxu0 0.0
    %1116 = vmatpush1.msra.mxu0 0.0
    %1117 = vmatprep.subr.mxu0 0.0
    %1118 = vmatpush1.msra.mxu0 0.0
    %1119 = vmatprep.subr.mxu0 0.0
    %1120 = vmatpush1.msra.mxu0 0.0
    %1121 = vmatprep.subr.mxu0 0.0
    %1122 = vmatpush1.msra.mxu0 0.0
    %1123 = vmatprep.subr.mxu0 0.0
    %1124 = vmatpush1.msra.mxu0 0.0
    %1125 = vmatprep.subr.mxu0 0.0
    %1126 = vmatpush1.msra.mxu0 0.0
    %1127 = vmatprep.subr.mxu0 0.0
    %1128 = vmatpush1.msra.mxu0 0.0
    %1129 = vmatprep.subr.mxu0 0.0
    %1130 = vmatpush1.msra.mxu0 0.0
    %1131 = vmatprep.subr.mxu0 0.0
    %1132 = vmatpush1.msra.mxu0 %v100
    %1133 = vmatprep.subr.mxu0 0.0
    %1134 = vmatpush1.msra.mxu0 %v99
    %1135 = vmatprep.subr.mxu0 0.0
    %1136 = vmatpush1.msra.mxu0 %v98
    %1137 = vmatprep.subr.mxu0 0.0
    %1138 = vmatpush1.msra.mxu0 %v97
    %1139 = vmatprep.subr.mxu0 0.0
    %1140 = vmatpush2.msra.mxu0 0.0
    %1141 = vmatprep.subr.mxu0 0.0
    %1142 = vmatpush2.msra.mxu0 0.0
    %1143 = vmatprep.subr.mxu0 0.0
    %1144 = vmatpush2.msra.mxu0 0.0
    %1145 = vmatprep.subr.mxu0 0.0
    %1146 = vmatpush2.msra.mxu0 0.0
    %1147 = vmatprep.subr.mxu0 0.0
    %1148 = vmatpush2.msra.mxu0 0.0
    %1149 = vmatprep.subr.mxu0 0.0
    %1150 = vmatpush2.msra.mxu0 0.0
    %1151 = vmatprep.subr.mxu0 0.0
    %1152 = vmatpush2.msra.mxu0 0.0
    %1153 = vmatprep.subr.mxu0 0.0
    %1154 = vmatpush2.msra.mxu0 0.0
    %1155 = vmatprep.subr.mxu0 0.0
    %1156 = vmatpush2.msra.mxu0 0.0
    %1157 = vmatprep.subr.mxu0 0.0
    %1158 = vmatpush2.msra.mxu0 0.0
    %1159 = vmatprep.subr.mxu0 0.0
    %1160 = vmatpush2.msra.mxu0 0.0
    %1161 = vmatprep.subr.mxu0 0.0
    %1162 = vmatpush2.msra.mxu0 0.0
    %1163 = vmatprep.subr.mxu0 0.0
    %1164 = vmatpush2.msra.mxu0 0.0
    %1165 = vmatprep.subr.mxu0 0.0
    %1166 = vmatpush2.msra.mxu0 0.0
    %1167 = vmatprep.subr.mxu0 0.0
    %1168 = vmatpush2.msra.mxu0 0.0
    %1169 = vmatprep.subr.mxu0 0.0
    %1170 = vmatpush2.msra.mxu0 0.0
    %1171 = vmatprep.mubr.f32.mxu0 0.0
    %1172 = vmatmul.mubr.f32.gmra.mxu0 %v1105
    %v1173 = vpop.f32.mrf.mxu0
    %v1174 = vadd.f32 0.0, %v1173
    %v1175 = vpop.f32.mrf.mxu0
    %1176 = vdwg.mxu0
    %v1178 = vrot.slane %v1104, 3
    %1179 = vrot.lane.b32.xlu0 %v1178, 32
    %v1180 = vpop.permute.xlu0 %1179
    %v1181 = vsel %vm188, %v1180, 0
    %1183 = vmatprep.subr.mxu0 0.0
    %1184 = vmatpush1.msra.mxu0 0.0
    %1185 = vmatprep.subr.mxu0 0.0
    %1186 = vmatpush1.msra.mxu0 0.0
    %1187 = vmatprep.subr.mxu0 0.0
    %1188 = vmatpush1.msra.mxu0 0.0
    %1189 = vmatprep.subr.mxu0 0.0
    %1190 = vmatpush1.msra.mxu0 0.0
    %1191 = vmatprep.subr.mxu0 0.0
    %1192 = vmatpush1.msra.mxu0 0.0
    %1193 = vmatprep.subr.mxu0 0.0
    %1194 = vmatpush1.msra.mxu0 0.0
    %1195 = vmatprep.subr.mxu0 0.0
    %1196 = vmatpush1.msra.mxu0 0.0
    %1197 = vmatprep.subr.mxu0 0.0
    %1198 = vmatpush1.msra.mxu0 0.0
    %1199 = vmatprep.subr.mxu0 0.0
    %1200 = vmatpush1.msra.mxu0 0.0
    %1201 = vmatprep.subr.mxu0 0.0
    %1202 = vmatpush1.msra.mxu0 0.0
    %1203 = vmatprep.subr.mxu0 0.0
    %1204 = vmatpush1.msra.mxu0 0.0
    %1205 = vmatprep.subr.mxu0 0.0
    %1206 = vmatpush1.msra.mxu0 0.0
    %1207 = vmatprep.subr.mxu0 0.0
    %1208 = vmatpush1.msra.mxu0 %v92
    %1209 = vmatprep.subr.mxu0 0.0
    %1210 = vmatpush1.msra.mxu0 %v91
    %1211 = vmatprep.subr.mxu0 0.0
    %1212 = vmatpush1.msra.mxu0 %v90
    %1213 = vmatprep.subr.mxu0 0.0
    %1214 = vmatpush1.msra.mxu0 %v89
    %1215 = vmatprep.subr.mxu0 0.0
    %1216 = vmatpush2.msra.mxu0 0.0
    %1217 = vmatprep.subr.mxu0 0.0
    %1218 = vmatpush2.msra.mxu0 0.0
    %1219 = vmatprep.subr.mxu0 0.0
    %1220 = vmatpush2.msra.mxu0 0.0
    %1221 = vmatprep.subr.mxu0 0.0
    %1222 = vmatpush2.msra.mxu0 0.0
    %1223 = vmatprep.subr.mxu0 0.0
    %1224 = vmatpush2.msra.mxu0 0.0
    %1225 = vmatprep.subr.mxu0 0.0
    %1226 = vmatpush2.msra.mxu0 0.0
    %1227 = vmatprep.subr.mxu0 0.0
    %1228 = vmatpush2.msra.mxu0 0.0
    %1229 = vmatprep.subr.mxu0 0.0
    %1230 = vmatpush2.msra.mxu0 0.0
    %1231 = vmatprep.subr.mxu0 0.0
    %1232 = vmatpush2.msra.mxu0 0.0
    %1233 = vmatprep.subr.mxu0 0.0
    %1234 = vmatpush2.msra.mxu0 0.0
    %1235 = vmatprep.subr.mxu0 0.0
    %1236 = vmatpush2.msra.mxu0 0.0
    %1237 = vmatprep.subr.mxu0 0.0
    %1238 = vmatpush2.msra.mxu0 0.0
    %1239 = vmatprep.subr.mxu0 0.0
    %1240 = vmatpush2.msra.mxu0 0.0
    %1241 = vmatprep.subr.mxu0 0.0
    %1242 = vmatpush2.msra.mxu0 0.0
    %1243 = vmatprep.subr.mxu0 0.0
    %1244 = vmatpush2.msra.mxu0 0.0
    %1245 = vmatprep.subr.mxu0 0.0
    %1246 = vmatpush2.msra.mxu0 0.0
    %1247 = vmatprep.mubr.f32.mxu0 0.0
    %1248 = vmatmul.mubr.f32.gmra.mxu0 %v1181
    %v1249 = vpop.f32.mrf.mxu0
    %v1250 = vadd.f32 %v1174, %v1249
    %v1251 = vpop.f32.mrf.mxu0
    %1252 = vdwg.mxu0
    %v1253 = vadd.f32 %v1250, %v102
    %v1254 = vtanh.pop %v1253
    %v1255 = vmul.f32 %v1254, %v85
    %v1256 = vadd.f32 %v1255, %v86
    %v1257 = vmul.f32 %v1256, %v996
    %1259 = vrot.lane.b32.xlu0 %v1256, 64
    %v1260 = vpop.permute.xlu0 %1259
    %v1262 = vmul.f32 %v1256, %v1260
    %1264 = vrot.lane.b32.xlu0 %v1262, 32
    %v1265 = vpop.permute.xlu0 %1264
    %v1267 = vadd.f32 %v1257, %v1265
    %v1268 = vtanh.pop %v1267
    %1270 = vrot.lane.b32.xlu0 %v1268, 64
    %v1271 = vpop.permute.xlu0 %1270
    %v1273 = vmul.f32 %v1256, %v1271
    %1275 = vrot.lane.b32.xlu0 %v1273, 32
    %v1276 = vpop.permute.xlu0 %1275
    %1278 = vst.msk [vmem:[#allocation2 + $0x3] sm:$0x1] %vm464, %v1276
    %1279 = vmatprep.subr.mxu0 0.0
    %1280 = vmatpush1.msra.mxu0 0.0
    %1281 = vmatprep.subr.mxu0 0.0
    %1282 = vmatpush1.msra.mxu0 0.0
    %1283 = vmatprep.subr.mxu0 0.0
    %1284 = vmatpush1.msra.mxu0 0.0
    %1285 = vmatprep.subr.mxu0 0.0
    %1286 = vmatpush1.msra.mxu0 0.0
    %1287 = vmatprep.subr.mxu0 0.0
    %1288 = vmatpush1.msra.mxu0 0.0
    %1289 = vmatprep.subr.mxu0 0.0
    %1290 = vmatpush1.msra.mxu0 0.0
    %1291 = vmatprep.subr.mxu0 0.0
    %1292 = vmatpush1.msra.mxu0 0.0
    %1293 = vmatprep.subr.mxu0 0.0
    %1294 = vmatpush1.msra.mxu0 0.0
    %1295 = vmatprep.subr.mxu0 0.0
    %1296 = vmatpush1.msra.mxu0 0.0
    %1297 = vmatprep.subr.mxu0 0.0
    %1298 = vmatpush1.msra.mxu0 0.0
    %1299 = vmatprep.subr.mxu0 0.0
    %1300 = vmatpush1.msra.mxu0 0.0
    %1301 = vmatprep.subr.mxu0 0.0
    %1302 = vmatpush1.msra.mxu0 0.0
    %1303 = vmatprep.subr.mxu0 0.0
    %1304 = vmatpush1.msra.mxu0 %v96
    %1305 = vmatprep.subr.mxu0 0.0
    %1306 = vmatpush1.msra.mxu0 %v95
    %1307 = vmatprep.subr.mxu0 0.0
    %1308 = vmatpush1.msra.mxu0 %v94
    %1309 = vmatprep.subr.mxu0 0.0
    %1310 = vmatpush1.msra.mxu0 %v93
    %1311 = vmatprep.subr.mxu0 0.0
    %1312 = vmatpush2.msra.mxu0 0.0
    %1313 = vmatprep.subr.mxu0 0.0
    %1314 = vmatpush2.msra.mxu0 0.0
    %1315 = vmatprep.subr.mxu0 0.0
    %1316 = vmatpush2.msra.mxu0 0.0
    %1317 = vmatprep.subr.mxu0 0.0
    %1318 = vmatpush2.msra.mxu0 0.0
    %1319 = vmatprep.subr.mxu0 0.0
    %1320 = vmatpush2.msra.mxu0 0.0
    %1321 = vmatprep.subr.mxu0 0.0
    %1322 = vmatpush2.msra.mxu0 0.0
    %1323 = vmatprep.subr.mxu0 0.0
    %1324 = vmatpush2.msra.mxu0 0.0
    %1325 = vmatprep.subr.mxu0 0.0
    %1326 = vmatpush2.msra.mxu0 0.0
    %1327 = vmatprep.subr.mxu0 0.0
    %1328 = vmatpush2.msra.mxu0 0.0
    %1329 = vmatprep.subr.mxu0 0.0
    %1330 = vmatpush2.msra.mxu0 0.0
    %1331 = vmatprep.subr.mxu0 0.0
    %1332 = vmatpush2.msra.mxu0 0.0
    %1333 = vmatprep.subr.mxu0 0.0
    %1334 = vmatpush2.msra.mxu0 0.0
    %1335 = vmatprep.subr.mxu0 0.0
    %1336 = vmatpush2.msra.mxu0 0.0
    %1337 = vmatprep.subr.mxu0 0.0
    %1338 = vmatpush2.msra.mxu0 0.0
    %1339 = vmatprep.subr.mxu0 0.0
    %1340 = vmatpush2.msra.mxu0 0.0
    %1341 = vmatprep.subr.mxu0 0.0
    %1342 = vmatpush2.msra.mxu0 0.0
    %1343 = vmatprep.mubr.f32.mxu0 0.0
    %1344 = vmatmul.mubr.f32.gmra.mxu0 %v1181
    %v1345 = vpop.f32.mrf.mxu0
    %v1346 = vadd.f32 0.0, %v1345
    %v1347 = vpop.f32.mrf.mxu0
    %1348 = vdwg.mxu0
    %v1350 = vrot.slane %v1346, 4
    %v1352 = vadd.f32 %v181, %v1350
    %v1353 = vtanh.pop %v1352
    %v1354 = vmul.f32 %v1353, %v85
    %v1355 = vadd.f32 %v1354, %v86
    %v1357 = vrot.slane %v1098, 7
    %v1359 = vmul.f32 %v1355, %v1357
    %1361 = vrot.lane.b32.xlu0 %v1355, 64
    %v1362 = vpop.permute.xlu0 %1361
    %v1364 = vmul.f32 %v1355, %v1362
    %1366 = vrot.lane.b32.xlu0 %v1364, 32
    %v1367 = vpop.permute.xlu0 %1366
    %v1369 = vadd.f32 %v1359, %v1367
    %v1370 = vtanh.pop %v1369
    %1372 = vrot.lane.b32.xlu0 %v1370, 64
    %v1373 = vpop.permute.xlu0 %1372
    %v1375 = vmul.f32 %v1355, %v1373
    %v1376 = vsel %vm188, %v1276, 0
    %1378 = vmatprep.subr.mxu0 0.0
    %1379 = vmatpush1.msra.mxu0 0.0
    %1380 = vmatprep.subr.mxu0 0.0
    %1381 = vmatpush1.msra.mxu0 0.0
    %1382 = vmatprep.subr.mxu0 0.0
    %1383 = vmatpush1.msra.mxu0 0.0
    %1384 = vmatprep.subr.mxu0 0.0
    %1385 = vmatpush1.msra.mxu0 0.0
    %1386 = vmatprep.subr.mxu0 0.0
    %1387 = vmatpush1.msra.mxu0 0.0
    %1388 = vmatprep.subr.mxu0 0.0
    %1389 = vmatpush1.msra.mxu0 0.0
    %1390 = vmatprep.subr.mxu0 0.0
    %1391 = vmatpush1.msra.mxu0 0.0
    %1392 = vmatprep.subr.mxu0 0.0
    %1393 = vmatpush1.msra.mxu0 0.0
    %1394 = vmatprep.subr.mxu0 0.0
    %1395 = vmatpush1.msra.mxu0 0.0
    %1396 = vmatprep.subr.mxu0 0.0
    %1397 = vmatpush1.msra.mxu0 0.0
    %1398 = vmatprep.subr.mxu0 0.0
    %1399 = vmatpush1.msra.mxu0 0.0
    %1400 = vmatprep.subr.mxu0 0.0
    %1401 = vmatpush1.msra.mxu0 0.0
    %1402 = vmatprep.subr.mxu0 0.0
    %1403 = vmatpush1.msra.mxu0 %v100
    %1404 = vmatprep.subr.mxu0 0.0
    %1405 = vmatpush1.msra.mxu0 %v99
    %1406 = vmatprep.subr.mxu0 0.0
    %1407 = vmatpush1.msra.mxu0 %v98
    %1408 = vmatprep.subr.mxu0 0.0
    %1409 = vmatpush1.msra.mxu0 %v97
    %1410 = vmatprep.subr.mxu0 0.0
    %1411 = vmatpush2.msra.mxu0 0.0
    %1412 = vmatprep.subr.mxu0 0.0
    %1413 = vmatpush2.msra.mxu0 0.0
    %1414 = vmatprep.subr.mxu0 0.0
    %1415 = vmatpush2.msra.mxu0 0.0
    %1416 = vmatprep.subr.mxu0 0.0
    %1417 = vmatpush2.msra.mxu0 0.0
    %1418 = vmatprep.subr.mxu0 0.0
    %1419 = vmatpush2.msra.mxu0 0.0
    %1420 = vmatprep.subr.mxu0 0.0
    %1421 = vmatpush2.msra.mxu0 0.0
    %1422 = vmatprep.subr.mxu0 0.0
    %1423 = vmatpush2.msra.mxu0 0.0
    %1424 = vmatprep.subr.mxu0 0.0
    %1425 = vmatpush2.msra.mxu0 0.0
    %1426 = vmatprep.subr.mxu0 0.0
    %1427 = vmatpush2.msra.mxu0 0.0
    %1428 = vmatprep.subr.mxu0 0.0
    %1429 = vmatpush2.msra.mxu0 0.0
    %1430 = vmatprep.subr.mxu0 0.0
    %1431 = vmatpush2.msra.mxu0 0.0
    %1432 = vmatprep.subr.mxu0 0.0
    %1433 = vmatpush2.msra.mxu0 0.0
    %1434 = vmatprep.subr.mxu0 0.0
    %1435 = vmatpush2.msra.mxu0 0.0
    %1436 = vmatprep.subr.mxu0 0.0
    %1437 = vmatpush2.msra.mxu0 0.0
    %1438 = vmatprep.subr.mxu0 0.0
    %1439 = vmatpush2.msra.mxu0 0.0
    %1440 = vmatprep.subr.mxu0 0.0
    %1441 = vmatpush2.msra.mxu0 0.0
    %1442 = vmatprep.mubr.f32.mxu0 0.0
    %1443 = vmatmul.mubr.f32.gmra.mxu0 %v1376
    %v1444 = vpop.f32.mrf.mxu0
    %v1445 = vadd.f32 0.0, %v1444
    %v1446 = vpop.f32.mrf.mxu0
    %1447 = vdwg.mxu0
    %v1449 = vrot.slane %v1375, 4
    %1450 = vrot.lane.b32.xlu0 %v1449, 32
    %v1451 = vpop.permute.xlu0 %1450
    %v1452 = vsel %vm188, %v1451, 0
    %1454 = vmatprep.subr.mxu0 0.0
    %1455 = vmatpush1.msra.mxu0 0.0
    %1456 = vmatprep.subr.mxu0 0.0
    %1457 = vmatpush1.msra.mxu0 0.0
    %1458 = vmatprep.subr.mxu0 0.0
    %1459 = vmatpush1.msra.mxu0 0.0
    %1460 = vmatprep.subr.mxu0 0.0
    %1461 = vmatpush1.msra.mxu0 0.0
    %1462 = vmatprep.subr.mxu0 0.0
    %1463 = vmatpush1.msra.mxu0 0.0
    %1464 = vmatprep.subr.mxu0 0.0
    %1465 = vmatpush1.msra.mxu0 0.0
    %1466 = vmatprep.subr.mxu0 0.0
    %1467 = vmatpush1.msra.mxu0 0.0
    %1468 = vmatprep.subr.mxu0 0.0
    %1469 = vmatpush1.msra.mxu0 0.0
    %1470 = vmatprep.subr.mxu0 0.0
    %1471 = vmatpush1.msra.mxu0 0.0
    %1472 = vmatprep.subr.mxu0 0.0
    %1473 = vmatpush1.msra.mxu0 0.0
    %1474 = vmatprep.subr.mxu0 0.0
    %1475 = vmatpush1.msra.mxu0 0.0
    %1476 = vmatprep.subr.mxu0 0.0
    %1477 = vmatpush1.msra.mxu0 0.0
    %1478 = vmatprep.subr.mxu0 0.0
    %1479 = vmatpush1.msra.mxu0 %v92
    %1480 = vmatprep.subr.mxu0 0.0
    %1481 = vmatpush1.msra.mxu0 %v91
    %1482 = vmatprep.subr.mxu0 0.0
    %1483 = vmatpush1.msra.mxu0 %v90
    %1484 = vmatprep.subr.mxu0 0.0
    %1485 = vmatpush1.msra.mxu0 %v89
    %1486 = vmatprep.subr.mxu0 0.0
    %1487 = vmatpush2.msra.mxu0 0.0
    %1488 = vmatprep.subr.mxu0 0.0
    %1489 = vmatpush2.msra.mxu0 0.0
    %1490 = vmatprep.subr.mxu0 0.0
    %1491 = vmatpush2.msra.mxu0 0.0
    %1492 = vmatprep.subr.mxu0 0.0
    %1493 = vmatpush2.msra.mxu0 0.0
    %1494 = vmatprep.subr.mxu0 0.0
    %1495 = vmatpush2.msra.mxu0 0.0
    %1496 = vmatprep.subr.mxu0 0.0
    %1497 = vmatpush2.msra.mxu0 0.0
    %1498 = vmatprep.subr.mxu0 0.0
    %1499 = vmatpush2.msra.mxu0 0.0
    %1500 = vmatprep.subr.mxu0 0.0
    %1501 = vmatpush2.msra.mxu0 0.0
    %1502 = vmatprep.subr.mxu0 0.0
    %1503 = vmatpush2.msra.mxu0 0.0
    %1504 = vmatprep.subr.mxu0 0.0
    %1505 = vmatpush2.msra.mxu0 0.0
    %1506 = vmatprep.subr.mxu0 0.0
    %1507 = vmatpush2.msra.mxu0 0.0
    %1508 = vmatprep.subr.mxu0 0.0
    %1509 = vmatpush2.msra.mxu0 0.0
    %1510 = vmatprep.subr.mxu0 0.0
    %1511 = vmatpush2.msra.mxu0 0.0
    %1512 = vmatprep.subr.mxu0 0.0
    %1513 = vmatpush2.msra.mxu0 0.0
    %1514 = vmatprep.subr.mxu0 0.0
    %1515 = vmatpush2.msra.mxu0 0.0
    %1516 = vmatprep.subr.mxu0 0.0
    %1517 = vmatpush2.msra.mxu0 0.0
    %1518 = vmatprep.mubr.f32.mxu0 0.0
    %1519 = vmatmul.mubr.f32.gmra.mxu0 %v1452
    %v1520 = vpop.f32.mrf.mxu0
    %v1521 = vadd.f32 %v1445, %v1520
    %v1522 = vpop.f32.mrf.mxu0
    %1523 = vdwg.mxu0
    %v1524 = vadd.f32 %v1521, %v102
    %v1525 = vtanh.pop %v1524
    %v1526 = vmul.f32 %v1525, %v85
    %v1527 = vadd.f32 %v1526, %v86
    %v1528 = vmul.f32 %v1527, %v1267
    %1530 = vrot.lane.b32.xlu0 %v1527, 64
    %v1531 = vpop.permute.xlu0 %1530
    %v1533 = vmul.f32 %v1527, %v1531
    %1535 = vrot.lane.b32.xlu0 %v1533, 32
    %v1536 = vpop.permute.xlu0 %1535
    %v1538 = vadd.f32 %v1528, %v1536
    %v1539 = vtanh.pop %v1538
    %1541 = vrot.lane.b32.xlu0 %v1539, 64
    %v1542 = vpop.permute.xlu0 %1541
    %v1544 = vmul.f32 %v1527, %v1542
    %1546 = vrot.lane.b32.xlu0 %v1544, 32
    %v1547 = vpop.permute.xlu0 %1546
    %1549 = vst.msk [vmem:[#allocation2 + $0x4] sm:$0x1] %vm464, %v1547
    %1550 = vmatprep.subr.mxu0 0.0
    %1551 = vmatpush1.msra.mxu0 0.0
    %1552 = vmatprep.subr.mxu0 0.0
    %1553 = vmatpush1.msra.mxu0 0.0
    %1554 = vmatprep.subr.mxu0 0.0
    %1555 = vmatpush1.msra.mxu0 0.0
    %1556 = vmatprep.subr.mxu0 0.0
    %1557 = vmatpush1.msra.mxu0 0.0
    %1558 = vmatprep.subr.mxu0 0.0
    %1559 = vmatpush1.msra.mxu0 0.0
    %1560 = vmatprep.subr.mxu0 0.0
    %1561 = vmatpush1.msra.mxu0 0.0
    %1562 = vmatprep.subr.mxu0 0.0
    %1563 = vmatpush1.msra.mxu0 0.0
    %1564 = vmatprep.subr.mxu0 0.0
    %1565 = vmatpush1.msra.mxu0 0.0
    %1566 = vmatprep.subr.mxu0 0.0
    %1567 = vmatpush1.msra.mxu0 0.0
    %1568 = vmatprep.subr.mxu0 0.0
    %1569 = vmatpush1.msra.mxu0 0.0
    %1570 = vmatprep.subr.mxu0 0.0
    %1571 = vmatpush1.msra.mxu0 0.0
    %1572 = vmatprep.subr.mxu0 0.0
    %1573 = vmatpush1.msra.mxu0 0.0
    %1574 = vmatprep.subr.mxu0 0.0
    %1575 = vmatpush1.msra.mxu0 %v96
    %1576 = vmatprep.subr.mxu0 0.0
    %1577 = vmatpush1.msra.mxu0 %v95
    %1578 = vmatprep.subr.mxu0 0.0
    %1579 = vmatpush1.msra.mxu0 %v94
    %1580 = vmatprep.subr.mxu0 0.0
    %1581 = vmatpush1.msra.mxu0 %v93
    %1582 = vmatprep.subr.mxu0 0.0
    %1583 = vmatpush2.msra.mxu0 0.0
    %1584 = vmatprep.subr.mxu0 0.0
    %1585 = vmatpush2.msra.mxu0 0.0
    %1586 = vmatprep.subr.mxu0 0.0
    %1587 = vmatpush2.msra.mxu0 0.0
    %1588 = vmatprep.subr.mxu0 0.0
    %1589 = vmatpush2.msra.mxu0 0.0
    %1590 = vmatprep.subr.mxu0 0.0
    %1591 = vmatpush2.msra.mxu0 0.0
    %1592 = vmatprep.subr.mxu0 0.0
    %1593 = vmatpush2.msra.mxu0 0.0
    %1594 = vmatprep.subr.mxu0 0.0
    %1595 = vmatpush2.msra.mxu0 0.0
    %1596 = vmatprep.subr.mxu0 0.0
    %1597 = vmatpush2.msra.mxu0 0.0
    %1598 = vmatprep.subr.mxu0 0.0
    %1599 = vmatpush2.msra.mxu0 0.0
    %1600 = vmatprep.subr.mxu0 0.0
    %1601 = vmatpush2.msra.mxu0 0.0
    %1602 = vmatprep.subr.mxu0 0.0
    %1603 = vmatpush2.msra.mxu0 0.0
    %1604 = vmatprep.subr.mxu0 0.0
    %1605 = vmatpush2.msra.mxu0 0.0
    %1606 = vmatprep.subr.mxu0 0.0
    %1607 = vmatpush2.msra.mxu0 0.0
    %1608 = vmatprep.subr.mxu0 0.0
    %1609 = vmatpush2.msra.mxu0 0.0
    %1610 = vmatprep.subr.mxu0 0.0
    %1611 = vmatpush2.msra.mxu0 0.0
    %1612 = vmatprep.subr.mxu0 0.0
    %1613 = vmatpush2.msra.mxu0 0.0
    %1614 = vmatprep.mubr.f32.mxu0 0.0
    %1615 = vmatmul.mubr.f32.gmra.mxu0 %v1452
    %v1616 = vpop.f32.mrf.mxu0
    %v1617 = vadd.f32 0.0, %v1616
    %v1618 = vpop.f32.mrf.mxu0
    %1619 = vdwg.mxu0
    %v1621 = vrot.slane %v1617, 3
    %v1623 = vadd.f32 %v181, %v1621
    %v1624 = vtanh.pop %v1623
    %v1625 = vmul.f32 %v1624, %v85
    %v1626 = vadd.f32 %v1625, %v86
    %v1628 = vrot.slane %v1369, 7
    %v1630 = vmul.f32 %v1626, %v1628
    %1632 = vrot.lane.b32.xlu0 %v1626, 64
    %v1633 = vpop.permute.xlu0 %1632
    %v1635 = vmul.f32 %v1626, %v1633
    %1637 = vrot.lane.b32.xlu0 %v1635, 32
    %v1638 = vpop.permute.xlu0 %1637
    %v1640 = vadd.f32 %v1630, %v1638
    %v1641 = vtanh.pop %v1640
    %1643 = vrot.lane.b32.xlu0 %v1641, 64
    %v1644 = vpop.permute.xlu0 %1643
    %v1646 = vmul.f32 %v1626, %v1644
    %v1647 = vsel %vm188, %v1547, 0
    %1649 = vmatprep.subr.mxu0 0.0
    %1650 = vmatpush1.msra.mxu0 0.0
    %1651 = vmatprep.subr.mxu0 0.0
    %1652 = vmatpush1.msra.mxu0 0.0
    %1653 = vmatprep.subr.mxu0 0.0
    %1654 = vmatpush1.msra.mxu0 0.0
    %1655 = vmatprep.subr.mxu0 0.0
    %1656 = vmatpush1.msra.mxu0 0.0
    %1657 = vmatprep.subr.mxu0 0.0
    %1658 = vmatpush1.msra.mxu0 0.0
    %1659 = vmatprep.subr.mxu0 0.0
    %1660 = vmatpush1.msra.mxu0 0.0
    %1661 = vmatprep.subr.mxu0 0.0
    %1662 = vmatpush1.msra.mxu0 0.0
    %1663 = vmatprep.subr.mxu0 0.0
    %1664 = vmatpush1.msra.mxu0 0.0
    %1665 = vmatprep.subr.mxu0 0.0
    %1666 = vmatpush1.msra.mxu0 0.0
    %1667 = vmatprep.subr.mxu0 0.0
    %1668 = vmatpush1.msra.mxu0 0.0
    %1669 = vmatprep.subr.mxu0 0.0
    %1670 = vmatpush1.msra.mxu0 0.0
    %1671 = vmatprep.subr.mxu0 0.0
    %1672 = vmatpush1.msra.mxu0 0.0
    %1673 = vmatprep.subr.mxu0 0.0
    %1674 = vmatpush1.msra.mxu0 %v100
    %1675 = vmatprep.subr.mxu0 0.0
    %1676 = vmatpush1.msra.mxu0 %v99
    %1677 = vmatprep.subr.mxu0 0.0
    %1678 = vmatpush1.msra.mxu0 %v98
    %1679 = vmatprep.subr.mxu0 0.0
    %1680 = vmatpush1.msra.mxu0 %v97
    %1681 = vmatprep.subr.mxu0 0.0
    %1682 = vmatpush2.msra.mxu0 0.0
    %1683 = vmatprep.subr.mxu0 0.0
    %1684 = vmatpush2.msra.mxu0 0.0
    %1685 = vmatprep.subr.mxu0 0.0
    %1686 = vmatpush2.msra.mxu0 0.0
    %1687 = vmatprep.subr.mxu0 0.0
    %1688 = vmatpush2.msra.mxu0 0.0
    %1689 = vmatprep.subr.mxu0 0.0
    %1690 = vmatpush2.msra.mxu0 0.0
    %1691 = vmatprep.subr.mxu0 0.0
    %1692 = vmatpush2.msra.mxu0 0.0
    %1693 = vmatprep.subr.mxu0 0.0
    %1694 = vmatpush2.msra.mxu0 0.0
    %1695 = vmatprep.subr.mxu0 0.0
    %1696 = vmatpush2.msra.mxu0 0.0
    %1697 = vmatprep.subr.mxu0 0.0
    %1698 = vmatpush2.msra.mxu0 0.0
    %1699 = vmatprep.subr.mxu0 0.0
    %1700 = vmatpush2.msra.mxu0 0.0
    %1701 = vmatprep.subr.mxu0 0.0
    %1702 = vmatpush2.msra.mxu0 0.0
    %1703 = vmatprep.subr.mxu0 0.0
    %1704 = vmatpush2.msra.mxu0 0.0
    %1705 = vmatprep.subr.mxu0 0.0
    %1706 = vmatpush2.msra.mxu0 0.0
    %1707 = vmatprep.subr.mxu0 0.0
    %1708 = vmatpush2.msra.mxu0 0.0
    %1709 = vmatprep.subr.mxu0 0.0
    %1710 = vmatpush2.msra.mxu0 0.0
    %1711 = vmatprep.subr.mxu0 0.0
    %1712 = vmatpush2.msra.mxu0 0.0
    %1713 = vmatprep.mubr.f32.mxu0 0.0
    %1714 = vmatmul.mubr.f32.gmra.mxu0 %v1647
    %v1715 = vpop.f32.mrf.mxu0
    %v1716 = vadd.f32 0.0, %v1715
    %v1717 = vpop.f32.mrf.mxu0
    %1718 = vdwg.mxu0
    %v1720 = vrot.slane %v1646, 5
    %1721 = vrot.lane.b32.xlu0 %v1720, 32
    %v1722 = vpop.permute.xlu0 %1721
    %v1723 = vsel %vm188, %v1722, 0
    %1725 = vmatprep.subr.mxu0 0.0
    %1726 = vmatpush1.msra.mxu0 0.0
    %1727 = vmatprep.subr.mxu0 0.0
    %1728 = vmatpush1.msra.mxu0 0.0
    %1729 = vmatprep.subr.mxu0 0.0
    %1730 = vmatpush1.msra.mxu0 0.0
    %1731 = vmatprep.subr.mxu0 0.0
    %1732 = vmatpush1.msra.mxu0 0.0
    %1733 = vmatprep.subr.mxu0 0.0
    %1734 = vmatpush1.msra.mxu0 0.0
    %1735 = vmatprep.subr.mxu0 0.0
    %1736 = vmatpush1.msra.mxu0 0.0
    %1737 = vmatprep.subr.mxu0 0.0
    %1738 = vmatpush1.msra.mxu0 0.0
    %1739 = vmatprep.subr.mxu0 0.0
    %1740 = vmatpush1.msra.mxu0 0.0
    %1741 = vmatprep.subr.mxu0 0.0
    %1742 = vmatpush1.msra.mxu0 0.0
    %1743 = vmatprep.subr.mxu0 0.0
    %1744 = vmatpush1.msra.mxu0 0.0
    %1745 = vmatprep.subr.mxu0 0.0
    %1746 = vmatpush1.msra.mxu0 0.0
    %1747 = vmatprep.subr.mxu0 0.0
    %1748 = vmatpush1.msra.mxu0 0.0
    %1749 = vmatprep.subr.mxu0 0.0
    %1750 = vmatpush1.msra.mxu0 %v92
    %1751 = vmatprep.subr.mxu0 0.0
    %1752 = vmatpush1.msra.mxu0 %v91
    %1753 = vmatprep.subr.mxu0 0.0
    %1754 = vmatpush1.msra.mxu0 %v90
    %1755 = vmatprep.subr.mxu0 0.0
    %1756 = vmatpush1.msra.mxu0 %v89
    %1757 = vmatprep.subr.mxu0 0.0
    %1758 = vmatpush2.msra.mxu0 0.0
    %1759 = vmatprep.subr.mxu0 0.0
    %1760 = vmatpush2.msra.mxu0 0.0
    %1761 = vmatprep.subr.mxu0 0.0
    %1762 = vmatpush2.msra.mxu0 0.0
    %1763 = vmatprep.subr.mxu0 0.0
    %1764 = vmatpush2.msra.mxu0 0.0
    %1765 = vmatprep.subr.mxu0 0.0
    %1766 = vmatpush2.msra.mxu0 0.0
    %1767 = vmatprep.subr.mxu0 0.0
    %1768 = vmatpush2.msra.mxu0 0.0
    %1769 = vmatprep.subr.mxu0 0.0
    %1770 = vmatpush2.msra.mxu0 0.0
    %1771 = vmatprep.subr.mxu0 0.0
    %1772 = vmatpush2.msra.mxu0 0.0
    %1773 = vmatprep.subr.mxu0 0.0
    %1774 = vmatpush2.msra.mxu0 0.0
    %1775 = vmatprep.subr.mxu0 0.0
    %1776 = vmatpush2.msra.mxu0 0.0
    %1777 = vmatprep.subr.mxu0 0.0
    %1778 = vmatpush2.msra.mxu0 0.0
    %1779 = vmatprep.subr.mxu0 0.0
    %1780 = vmatpush2.msra.mxu0 0.0
    %1781 = vmatprep.subr.mxu0 0.0
    %1782 = vmatpush2.msra.mxu0 0.0
    %1783 = vmatprep.subr.mxu0 0.0
    %1784 = vmatpush2.msra.mxu0 0.0
    %1785 = vmatprep.subr.mxu0 0.0
    %1786 = vmatpush2.msra.mxu0 0.0
    %1787 = vmatprep.subr.mxu0 0.0
    %1788 = vmatpush2.msra.mxu0 0.0
    %1789 = vmatprep.mubr.f32.mxu0 0.0
    %1790 = vmatmul.mubr.f32.gmra.mxu0 %v1723
    %v1791 = vpop.f32.mrf.mxu0
    %v1792 = vadd.f32 %v1716, %v1791
    %v1793 = vpop.f32.mrf.mxu0
    %1794 = vdwg.mxu0
    %v1795 = vadd.f32 %v1792, %v102
    %v1796 = vtanh.pop %v1795
    %v1797 = vmul.f32 %v1796, %v85
    %v1798 = vadd.f32 %v1797, %v86
    %v1799 = vmul.f32 %v1798, %v1538
    %1801 = vrot.lane.b32.xlu0 %v1798, 64
    %v1802 = vpop.permute.xlu0 %1801
    %v1804 = vmul.f32 %v1798, %v1802
    %1806 = vrot.lane.b32.xlu0 %v1804, 32
    %v1807 = vpop.permute.xlu0 %1806
    %v1809 = vadd.f32 %v1799, %v1807
    %v1810 = vtanh.pop %v1809
    %1812 = vrot.lane.b32.xlu0 %v1810, 64
    %v1813 = vpop.permute.xlu0 %1812
    %v1815 = vmul.f32 %v1798, %v1813
    %1817 = vrot.lane.b32.xlu0 %v1815, 32
    %v1818 = vpop.permute.xlu0 %1817
    %1820 = vst.msk [vmem:[#allocation2 + $0x5] sm:$0x1] %vm464, %v1818
    %1821 = vmatprep.subr.mxu0 0.0
    %1822 = vmatpush1.msra.mxu0 0.0
    %1823 = vmatprep.subr.mxu0 0.0
    %1824 = vmatpush1.msra.mxu0 0.0
    %1825 = vmatprep.subr.mxu0 0.0
    %1826 = vmatpush1.msra.mxu0 0.0
    %1827 = vmatprep.subr.mxu0 0.0
    %1828 = vmatpush1.msra.mxu0 0.0
    %1829 = vmatprep.subr.mxu0 0.0
    %1830 = vmatpush1.msra.mxu0 0.0
    %1831 = vmatprep.subr.mxu0 0.0
    %1832 = vmatpush1.msra.mxu0 0.0
    %1833 = vmatprep.subr.mxu0 0.0
    %1834 = vmatpush1.msra.mxu0 0.0
    %1835 = vmatprep.subr.mxu0 0.0
    %1836 = vmatpush1.msra.mxu0 0.0
    %1837 = vmatprep.subr.mxu0 0.0
    %1838 = vmatpush1.msra.mxu0 0.0
    %1839 = vmatprep.subr.mxu0 0.0
    %1840 = vmatpush1.msra.mxu0 0.0
    %1841 = vmatprep.subr.mxu0 0.0
    %1842 = vmatpush1.msra.mxu0 0.0
    %1843 = vmatprep.subr.mxu0 0.0
    %1844 = vmatpush1.msra.mxu0 0.0
    %1845 = vmatprep.subr.mxu0 0.0
    %1846 = vmatpush1.msra.mxu0 %v96
    %1847 = vmatprep.subr.mxu0 0.0
    %1848 = vmatpush1.msra.mxu0 %v95
    %1849 = vmatprep.subr.mxu0 0.0
    %1850 = vmatpush1.msra.mxu0 %v94
    %1851 = vmatprep.subr.mxu0 0.0
    %1852 = vmatpush1.msra.mxu0 %v93
    %1853 = vmatprep.subr.mxu0 0.0
    %1854 = vmatpush2.msra.mxu0 0.0
    %1855 = vmatprep.subr.mxu0 0.0
    %1856 = vmatpush2.msra.mxu0 0.0
    %1857 = vmatprep.subr.mxu0 0.0
    %1858 = vmatpush2.msra.mxu0 0.0
    %1859 = vmatprep.subr.mxu0 0.0
    %1860 = vmatpush2.msra.mxu0 0.0
    %1861 = vmatprep.subr.mxu0 0.0
    %1862 = vmatpush2.msra.mxu0 0.0
    %1863 = vmatprep.subr.mxu0 0.0
    %1864 = vmatpush2.msra.mxu0 0.0
    %1865 = vmatprep.subr.mxu0 0.0
    %1866 = vmatpush2.msra.mxu0 0.0
    %1867 = vmatprep.subr.mxu0 0.0
    %1868 = vmatpush2.msra.mxu0 0.0
    %1869 = vmatprep.subr.mxu0 0.0
    %1870 = vmatpush2.msra.mxu0 0.0
    %1871 = vmatprep.subr.mxu0 0.0
    %1872 = vmatpush2.msra.mxu0 0.0
    %1873 = vmatprep.subr.mxu0 0.0
    %1874 = vmatpush2.msra.mxu0 0.0
    %1875 = vmatprep.subr.mxu0 0.0
    %1876 = vmatpush2.msra.mxu0 0.0
    %1877 = vmatprep.subr.mxu0 0.0
    %1878 = vmatpush2.msra.mxu0 0.0
    %1879 = vmatprep.subr.mxu0 0.0
    %1880 = vmatpush2.msra.mxu0 0.0
    %1881 = vmatprep.subr.mxu0 0.0
    %1882 = vmatpush2.msra.mxu0 0.0
    %1883 = vmatprep.subr.mxu0 0.0
    %1884 = vmatpush2.msra.mxu0 0.0
    %1885 = vmatprep.mubr.f32.mxu0 0.0
    %1886 = vmatmul.mubr.f32.gmra.mxu0 %v1723
    %v1887 = vpop.f32.mrf.mxu0
    %v1888 = vadd.f32 0.0, %v1887
    %v1889 = vpop.f32.mrf.mxu0
    %1890 = vdwg.mxu0
    %v1892 = vrot.slane %v1888, 2
    %v1894 = vadd.f32 %v181, %v1892
    %v1895 = vtanh.pop %v1894
    %v1896 = vmul.f32 %v1895, %v85
    %v1897 = vadd.f32 %v1896, %v86
    %v1899 = vrot.slane %v1640, 7
    %v1901 = vmul.f32 %v1897, %v1899
    %1903 = vrot.lane.b32.xlu0 %v1897, 64
    %v1904 = vpop.permute.xlu0 %1903
    %v1906 = vmul.f32 %v1897, %v1904
    %1908 = vrot.lane.b32.xlu0 %v1906, 32
    %v1909 = vpop.permute.xlu0 %1908
    %v1911 = vadd.f32 %v1901, %v1909
    %v1912 = vtanh.pop %v1911
    %1914 = vrot.lane.b32.xlu0 %v1912, 64
    %v1915 = vpop.permute.xlu0 %1914
    %v1917 = vmul.f32 %v1897, %v1915
    %v1918 = vsel %vm188, %v1818, 0
    %1920 = vmatprep.subr.mxu0 0.0
    %1921 = vmatpush1.msra.mxu0 0.0
    %1922 = vmatprep.subr.mxu0 0.0
    %1923 = vmatpush1.msra.mxu0 0.0
    %1924 = vmatprep.subr.mxu0 0.0
    %1925 = vmatpush1.msra.mxu0 0.0
    %1926 = vmatprep.subr.mxu0 0.0
    %1927 = vmatpush1.msra.mxu0 0.0
    %1928 = vmatprep.subr.mxu0 0.0
    %1929 = vmatpush1.msra.mxu0 0.0
    %1930 = vmatprep.subr.mxu0 0.0
    %1931 = vmatpush1.msra.mxu0 0.0
    %1932 = vmatprep.subr.mxu0 0.0
    %1933 = vmatpush1.msra.mxu0 0.0
    %1934 = vmatprep.subr.mxu0 0.0
    %1935 = vmatpush1.msra.mxu0 0.0
    %1936 = vmatprep.subr.mxu0 0.0
    %1937 = vmatpush1.msra.mxu0 0.0
    %1938 = vmatprep.subr.mxu0 0.0
    %1939 = vmatpush1.msra.mxu0 0.0
    %1940 = vmatprep.subr.mxu0 0.0
    %1941 = vmatpush1.msra.mxu0 0.0
    %1942 = vmatprep.subr.mxu0 0.0
    %1943 = vmatpush1.msra.mxu0 0.0
    %1944 = vmatprep.subr.mxu0 0.0
    %1945 = vmatpush1.msra.mxu0 %v100
    %1946 = vmatprep.subr.mxu0 0.0
    %1947 = vmatpush1.msra.mxu0 %v99
    %1948 = vmatprep.subr.mxu0 0.0
    %1949 = vmatpush1.msra.mxu0 %v98
    %1950 = vmatprep.subr.mxu0 0.0
    %1951 = vmatpush1.msra.mxu0 %v97
    %1952 = vmatprep.subr.mxu0 0.0
    %1953 = vmatpush2.msra.mxu0 0.0
    %1954 = vmatprep.subr.mxu0 0.0
    %1955 = vmatpush2.msra.mxu0 0.0
    %1956 = vmatprep.subr.mxu0 0.0
    %1957 = vmatpush2.msra.mxu0 0.0
    %1958 = vmatprep.subr.mxu0 0.0
    %1959 = vmatpush2.msra.mxu0 0.0
    %1960 = vmatprep.subr.mxu0 0.0
    %1961 = vmatpush2.msra.mxu0 0.0
    %1962 = vmatprep.subr.mxu0 0.0
    %1963 = vmatpush2.msra.mxu0 0.0
    %1964 = vmatprep.subr.mxu0 0.0
    %1965 = vmatpush2.msra.mxu0 0.0
    %1966 = vmatprep.subr.mxu0 0.0
    %1967 = vmatpush2.msra.mxu0 0.0
    %1968 = vmatprep.subr.mxu0 0.0
    %1969 = vmatpush2.msra.mxu0 0.0
    %1970 = vmatprep.subr.mxu0 0.0
    %1971 = vmatpush2.msra.mxu0 0.0
    %1972 = vmatprep.subr.mxu0 0.0
    %1973 = vmatpush2.msra.mxu0 0.0
    %1974 = vmatprep.subr.mxu0 0.0
    %1975 = vmatpush2.msra.mxu0 0.0
    %1976 = vmatprep.subr.mxu0 0.0
    %1977 = vmatpush2.msra.mxu0 0.0
    %1978 = vmatprep.subr.mxu0 0.0
    %1979 = vmatpush2.msra.mxu0 0.0
    %1980 = vmatprep.subr.mxu0 0.0
    %1981 = vmatpush2.msra.mxu0 0.0
    %1982 = vmatprep.subr.mxu0 0.0
    %1983 = vmatpush2.msra.mxu0 0.0
    %1984 = vmatprep.mubr.f32.mxu0 0.0
    %1985 = vmatmul.mubr.f32.gmra.mxu0 %v1918
    %v1986 = vpop.f32.mrf.mxu0
    %v1987 = vadd.f32 0.0, %v1986
    %v1988 = vpop.f32.mrf.mxu0
    %1989 = vdwg.mxu0
    %v1991 = vrot.slane %v1917, 6
    %1992 = vrot.lane.b32.xlu0 %v1991, 32
    %v1993 = vpop.permute.xlu0 %1992
    %v1994 = vsel %vm188, %v1993, 0
    %1996 = vmatprep.subr.mxu0 0.0
    %1997 = vmatpush1.msra.mxu0 0.0
    %1998 = vmatprep.subr.mxu0 0.0
    %1999 = vmatpush1.msra.mxu0 0.0
    %2000 = vmatprep.subr.mxu0 0.0
    %2001 = vmatpush1.msra.mxu0 0.0
    %2002 = vmatprep.subr.mxu0 0.0
    %2003 = vmatpush1.msra.mxu0 0.0
    %2004 = vmatprep.subr.mxu0 0.0
    %2005 = vmatpush1.msra.mxu0 0.0
    %2006 = vmatprep.subr.mxu0 0.0
    %2007 = vmatpush1.msra.mxu0 0.0
    %2008 = vmatprep.subr.mxu0 0.0
    %2009 = vmatpush1.msra.mxu0 0.0
    %2010 = vmatprep.subr.mxu0 0.0
    %2011 = vmatpush1.msra.mxu0 0.0
    %2012 = vmatprep.subr.mxu0 0.0
    %2013 = vmatpush1.msra.mxu0 0.0
    %2014 = vmatprep.subr.mxu0 0.0
    %2015 = vmatpush1.msra.mxu0 0.0
    %2016 = vmatprep.subr.mxu0 0.0
    %2017 = vmatpush1.msra.mxu0 0.0
    %2018 = vmatprep.subr.mxu0 0.0
    %2019 = vmatpush1.msra.mxu0 0.0
    %2020 = vmatprep.subr.mxu0 0.0
    %2021 = vmatpush1.msra.mxu0 %v92
    %2022 = vmatprep.subr.mxu0 0.0
    %2023 = vmatpush1.msra.mxu0 %v91
    %2024 = vmatprep.subr.mxu0 0.0
    %2025 = vmatpush1.msra.mxu0 %v90
    %2026 = vmatprep.subr.mxu0 0.0
    %2027 = vmatpush1.msra.mxu0 %v89
    %2028 = vmatprep.subr.mxu0 0.0
    %2029 = vmatpush2.msra.mxu0 0.0
    %2030 = vmatprep.subr.mxu0 0.0
    %2031 = vmatpush2.msra.mxu0 0.0
    %2032 = vmatprep.subr.mxu0 0.0
    %2033 = vmatpush2.msra.mxu0 0.0
    %2034 = vmatprep.subr.mxu0 0.0
    %2035 = vmatpush2.msra.mxu0 0.0
    %2036 = vmatprep.subr.mxu0 0.0
    %2037 = vmatpush2.msra.mxu0 0.0
    %2038 = vmatprep.subr.mxu0 0.0
    %2039 = vmatpush2.msra.mxu0 0.0
    %2040 = vmatprep.subr.mxu0 0.0
    %2041 = vmatpush2.msra.mxu0 0.0
    %2042 = vmatprep.subr.mxu0 0.0
    %2043 = vmatpush2.msra.mxu0 0.0
    %2044 = vmatprep.subr.mxu0 0.0
    %2045 = vmatpush2.msra.mxu0 0.0
    %2046 = vmatprep.subr.mxu0 0.0
    %2047 = vmatpush2.msra.mxu0 0.0
    %2048 = vmatprep.subr.mxu0 0.0
    %2049 = vmatpush2.msra.mxu0 0.0
    %2050 = vmatprep.subr.mxu0 0.0
    %2051 = vmatpush2.msra.mxu0 0.0
    %2052 = vmatprep.subr.mxu0 0.0
    %2053 = vmatpush2.msra.mxu0 0.0
    %2054 = vmatprep.subr.mxu0 0.0
    %2055 = vmatpush2.msra.mxu0 0.0
    %2056 = vmatprep.subr.mxu0 0.0
    %2057 = vmatpush2.msra.mxu0 0.0
    %2058 = vmatprep.subr.mxu0 0.0
    %2059 = vmatpush2.msra.mxu0 0.0
    %2060 = vmatprep.mubr.f32.mxu0 0.0
    %2061 = vmatmul.mubr.f32.gmra.mxu0 %v1994
    %v2062 = vpop.f32.mrf.mxu0
    %v2063 = vadd.f32 %v1987, %v2062
    %v2064 = vpop.f32.mrf.mxu0
    %2065 = vdwg.mxu0
    %v2066 = vadd.f32 %v2063, %v102
    %v2067 = vtanh.pop %v2066
    %v2068 = vmul.f32 %v2067, %v85
    %v2069 = vadd.f32 %v2068, %v86
    %v2070 = vmul.f32 %v2069, %v1809
    %2072 = vrot.lane.b32.xlu0 %v2069, 64
    %v2073 = vpop.permute.xlu0 %2072
    %v2075 = vmul.f32 %v2069, %v2073
    %2077 = vrot.lane.b32.xlu0 %v2075, 32
    %v2078 = vpop.permute.xlu0 %2077
    %v2080 = vadd.f32 %v2070, %v2078
    %v2081 = vtanh.pop %v2080
    %2083 = vrot.lane.b32.xlu0 %v2081, 64
    %v2084 = vpop.permute.xlu0 %2083
    %v2086 = vmul.f32 %v2069, %v2084
    %2088 = vrot.lane.b32.xlu0 %v2086, 32
    %v2089 = vpop.permute.xlu0 %2088
    %2091 = vst.msk [vmem:[#allocation2 + $0x6] sm:$0x1] %vm464, %v2089
    %2092 = vmatprep.subr.mxu0 0.0
    %2093 = vmatpush1.msra.mxu0 0.0
    %2094 = vmatprep.subr.mxu0 0.0
    %2095 = vmatpush1.msra.mxu0 0.0
    %2096 = vmatprep.subr.mxu0 0.0
    %2097 = vmatpush1.msra.mxu0 0.0
    %2098 = vmatprep.subr.mxu0 0.0
    %2099 = vmatpush1.msra.mxu0 0.0
    %2100 = vmatprep.subr.mxu0 0.0
    %2101 = vmatpush1.msra.mxu0 0.0
    %2102 = vmatprep.subr.mxu0 0.0
    %2103 = vmatpush1.msra.mxu0 0.0
    %2104 = vmatprep.subr.mxu0 0.0
    %2105 = vmatpush1.msra.mxu0 0.0
    %2106 = vmatprep.subr.mxu0 0.0
    %2107 = vmatpush1.msra.mxu0 0.0
    %2108 = vmatprep.subr.mxu0 0.0
    %2109 = vmatpush1.msra.mxu0 0.0
    %2110 = vmatprep.subr.mxu0 0.0
    %2111 = vmatpush1.msra.mxu0 0.0
    %2112 = vmatprep.subr.mxu0 0.0
    %2113 = vmatpush1.msra.mxu0 0.0
    %2114 = vmatprep.subr.mxu0 0.0
    %2115 = vmatpush1.msra.mxu0 0.0
    %2116 = vmatprep.subr.mxu0 0.0
    %2117 = vmatpush1.msra.mxu0 %v96
    %2118 = vmatprep.subr.mxu0 0.0
    %2119 = vmatpush1.msra.mxu0 %v95
    %2120 = vmatprep.subr.mxu0 0.0
    %2121 = vmatpush1.msra.mxu0 %v94
    %2122 = vmatprep.subr.mxu0 0.0
    %2123 = vmatpush1.msra.mxu0 %v93
    %2124 = vmatprep.subr.mxu0 0.0
    %2125 = vmatpush2.msra.mxu0 0.0
    %2126 = vmatprep.subr.mxu0 0.0
    %2127 = vmatpush2.msra.mxu0 0.0
    %2128 = vmatprep.subr.mxu0 0.0
    %2129 = vmatpush2.msra.mxu0 0.0
    %2130 = vmatprep.subr.mxu0 0.0
    %2131 = vmatpush2.msra.mxu0 0.0
    %2132 = vmatprep.subr.mxu0 0.0
    %2133 = vmatpush2.msra.mxu0 0.0
    %2134 = vmatprep.subr.mxu0 0.0
    %2135 = vmatpush2.msra.mxu0 0.0
    %2136 = vmatprep.subr.mxu0 0.0
    %2137 = vmatpush2.msra.mxu0 0.0
    %2138 = vmatprep.subr.mxu0 0.0
    %2139 = vmatpush2.msra.mxu0 0.0
    %2140 = vmatprep.subr.mxu0 0.0
    %2141 = vmatpush2.msra.mxu0 0.0
    %2142 = vmatprep.subr.mxu0 0.0
    %2143 = vmatpush2.msra.mxu0 0.0
    %2144 = vmatprep.subr.mxu0 0.0
    %2145 = vmatpush2.msra.mxu0 0.0
    %2146 = vmatprep.subr.mxu0 0.0
    %2147 = vmatpush2.msra.mxu0 0.0
    %2148 = vmatprep.subr.mxu0 0.0
    %2149 = vmatpush2.msra.mxu0 0.0
    %2150 = vmatprep.subr.mxu0 0.0
    %2151 = vmatpush2.msra.mxu0 0.0
    %2152 = vmatprep.subr.mxu0 0.0
    %2153 = vmatpush2.msra.mxu0 0.0
    %2154 = vmatprep.subr.mxu0 0.0
    %2155 = vmatpush2.msra.mxu0 0.0
    %2156 = vmatprep.mubr.f32.mxu0 0.0
    %2157 = vmatmul.mubr.f32.gmra.mxu0 %v1994
    %v2158 = vpop.f32.mrf.mxu0
    %v2159 = vadd.f32 0.0, %v2158
    %v2160 = vpop.f32.mrf.mxu0
    %2161 = vdwg.mxu0
    %v2163 = vrot.slane %v2159, 1
    %v2165 = vadd.f32 %v181, %v2163
    %v2166 = vtanh.pop %v2165
    %v2167 = vmul.f32 %v2166, %v85
    %v2168 = vadd.f32 %v2167, %v86
    %v2170 = vrot.slane %v1911, 7
    %v2172 = vmul.f32 %v2168, %v2170
    %2174 = vrot.lane.b32.xlu0 %v2168, 64
    %v2175 = vpop.permute.xlu0 %2174
    %v2177 = vmul.f32 %v2168, %v2175
    %2179 = vrot.lane.b32.xlu0 %v2177, 32
    %v2180 = vpop.permute.xlu0 %2179
    %v2182 = vadd.f32 %v2172, %v2180
    %v2183 = vtanh.pop %v2182
    %2185 = vrot.lane.b32.xlu0 %v2183, 64
    %v2186 = vpop.permute.xlu0 %2185
    %v2188 = vmul.f32 %v2168, %v2186
    %v2189 = vsel %vm188, %v2089, 0
    %2191 = vmatprep.subr.mxu0 0.0
    %2192 = vmatpush1.msra.mxu0 0.0
    %2193 = vmatprep.subr.mxu0 0.0
    %2194 = vmatpush1.msra.mxu0 0.0
    %2195 = vmatprep.subr.mxu0 0.0
    %2196 = vmatpush1.msra.mxu0 0.0
    %2197 = vmatprep.subr.mxu0 0.0
    %2198 = vmatpush1.msra.mxu0 0.0
    %2199 = vmatprep.subr.mxu0 0.0
    %2200 = vmatpush1.msra.mxu0 0.0
    %2201 = vmatprep.subr.mxu0 0.0
    %2202 = vmatpush1.msra.mxu0 0.0
    %2203 = vmatprep.subr.mxu0 0.0
    %2204 = vmatpush1.msra.mxu0 0.0
    %2205 = vmatprep.subr.mxu0 0.0
    %2206 = vmatpush1.msra.mxu0 0.0
    %2207 = vmatprep.subr.mxu0 0.0
    %2208 = vmatpush1.msra.mxu0 0.0
    %2209 = vmatprep.subr.mxu0 0.0
    %2210 = vmatpush1.msra.mxu0 0.0
    %2211 = vmatprep.subr.mxu0 0.0
    %2212 = vmatpush1.msra.mxu0 0.0
    %2213 = vmatprep.subr.mxu0 0.0
    %2214 = vmatpush1.msra.mxu0 0.0
    %2215 = vmatprep.subr.mxu0 0.0
    %2216 = vmatpush1.msra.mxu0 %v100
    %2217 = vmatprep.subr.mxu0 0.0
    %2218 = vmatpush1.msra.mxu0 %v99
    %2219 = vmatprep.subr.mxu0 0.0
    %2220 = vmatpush1.msra.mxu0 %v98
    %2221 = vmatprep.subr.mxu0 0.0
    %2222 = vmatpush1.msra.mxu0 %v97
    %2223 = vmatprep.subr.mxu0 0.0
    %2224 = vmatpush2.msra.mxu0 0.0
    %2225 = vmatprep.subr.mxu0 0.0
    %2226 = vmatpush2.msra.mxu0 0.0
    %2227 = vmatprep.subr.mxu0 0.0
    %2228 = vmatpush2.msra.mxu0 0.0
    %2229 = vmatprep.subr.mxu0 0.0
    %2230 = vmatpush2.msra.mxu0 0.0
    %2231 = vmatprep.subr.mxu0 0.0
    %2232 = vmatpush2.msra.mxu0 0.0
    %2233 = vmatprep.subr.mxu0 0.0
    %2234 = vmatpush2.msra.mxu0 0.0
    %2235 = vmatprep.subr.mxu0 0.0
    %2236 = vmatpush2.msra.mxu0 0.0
    %2237 = vmatprep.subr.mxu0 0.0
    %2238 = vmatpush2.msra.mxu0 0.0
    %2239 = vmatprep.subr.mxu0 0.0
    %2240 = vmatpush2.msra.mxu0 0.0
    %2241 = vmatprep.subr.mxu0 0.0
    %2242 = vmatpush2.msra.mxu0 0.0
    %2243 = vmatprep.subr.mxu0 0.0
    %2244 = vmatpush2.msra.mxu0 0.0
    %2245 = vmatprep.subr.mxu0 0.0
    %2246 = vmatpush2.msra.mxu0 0.0
    %2247 = vmatprep.subr.mxu0 0.0
    %2248 = vmatpush2.msra.mxu0 0.0
    %2249 = vmatprep.subr.mxu0 0.0
    %2250 = vmatpush2.msra.mxu0 0.0
    %2251 = vmatprep.subr.mxu0 0.0
    %2252 = vmatpush2.msra.mxu0 0.0
    %2253 = vmatprep.subr.mxu0 0.0
    %2254 = vmatpush2.msra.mxu0 0.0
    %2255 = vmatprep.mubr.f32.mxu0 0.0
    %2256 = vmatmul.mubr.f32.gmra.mxu0 %v2189
    %v2257 = vpop.f32.mrf.mxu0
    %v2258 = vadd.f32 0.0, %v2257
    %v2259 = vpop.f32.mrf.mxu0
    %2260 = vdwg.mxu0
    %v2262 = vrot.slane %v2188, 7
    %2263 = vrot.lane.b32.xlu0 %v2262, 32
    %v2264 = vpop.permute.xlu0 %2263
    %v2265 = vsel %vm188, %v2264, 0
    %2267 = vmatprep.subr.mxu0 0.0
    %2268 = vmatpush1.msra.mxu0 0.0
    %2269 = vmatprep.subr.mxu0 0.0
    %2270 = vmatpush1.msra.mxu0 0.0
    %2271 = vmatprep.subr.mxu0 0.0
    %2272 = vmatpush1.msra.mxu0 0.0
    %2273 = vmatprep.subr.mxu0 0.0
    %2274 = vmatpush1.msra.mxu0 0.0
    %2275 = vmatprep.subr.mxu0 0.0
    %2276 = vmatpush1.msra.mxu0 0.0
    %2277 = vmatprep.subr.mxu0 0.0
    %2278 = vmatpush1.msra.mxu0 0.0
    %2279 = vmatprep.subr.mxu0 0.0
    %2280 = vmatpush1.msra.mxu0 0.0
    %2281 = vmatprep.subr.mxu0 0.0
    %2282 = vmatpush1.msra.mxu0 0.0
    %2283 = vmatprep.subr.mxu0 0.0
    %2284 = vmatpush1.msra.mxu0 0.0
    %2285 = vmatprep.subr.mxu0 0.0
    %2286 = vmatpush1.msra.mxu0 0.0
    %2287 = vmatprep.subr.mxu0 0.0
    %2288 = vmatpush1.msra.mxu0 0.0
    %2289 = vmatprep.subr.mxu0 0.0
    %2290 = vmatpush1.msra.mxu0 0.0
    %2291 = vmatprep.subr.mxu0 0.0
    %2292 = vmatpush1.msra.mxu0 %v92
    %2293 = vmatprep.subr.mxu0 0.0
    %2294 = vmatpush1.msra.mxu0 %v91
    %2295 = vmatprep.subr.mxu0 0.0
    %2296 = vmatpush1.msra.mxu0 %v90
    %2297 = vmatprep.subr.mxu0 0.0
    %2298 = vmatpush1.msra.mxu0 %v89
    %2299 = vmatprep.subr.mxu0 0.0
    %2300 = vmatpush2.msra.mxu0 0.0
    %2301 = vmatprep.subr.mxu0 0.0
    %2302 = vmatpush2.msra.mxu0 0.0
    %2303 = vmatprep.subr.mxu0 0.0
    %2304 = vmatpush2.msra.mxu0 0.0
    %2305 = vmatprep.subr.mxu0 0.0
    %2306 = vmatpush2.msra.mxu0 0.0
    %2307 = vmatprep.subr.mxu0 0.0
    %2308 = vmatpush2.msra.mxu0 0.0
    %2309 = vmatprep.subr.mxu0 0.0
    %2310 = vmatpush2.msra.mxu0 0.0
    %2311 = vmatprep.subr.mxu0 0.0
    %2312 = vmatpush2.msra.mxu0 0.0
    %2313 = vmatprep.subr.mxu0 0.0
    %2314 = vmatpush2.msra.mxu0 0.0
    %2315 = vmatprep.subr.mxu0 0.0
    %2316 = vmatpush2.msra.mxu0 0.0
    %2317 = vmatprep.subr.mxu0 0.0
    %2318 = vmatpush2.msra.mxu0 0.0
    %2319 = vmatprep.subr.mxu0 0.0
    %2320 = vmatpush2.msra.mxu0 0.0
    %2321 = vmatprep.subr.mxu0 0.0
    %2322 = vmatpush2.msra.mxu0 0.0
    %2323 = vmatprep.subr.mxu0 0.0
    %2324 = vmatpush2.msra.mxu0 0.0
    %2325 = vmatprep.subr.mxu0 0.0
    %2326 = vmatpush2.msra.mxu0 0.0
    %2327 = vmatprep.subr.mxu0 0.0
    %2328 = vmatpush2.msra.mxu0 0.0
    %2329 = vmatprep.subr.mxu0 0.0
    %2330 = vmatpush2.msra.mxu0 0.0
    %2331 = vmatprep.mubr.f32.mxu0 0.0
    %2332 = vmatmul.mubr.f32.gmra.mxu0 %v2265
    %v2333 = vpop.f32.mrf.mxu0
    %v2334 = vadd.f32 %v2258, %v2333
    %v2335 = vpop.f32.mrf.mxu0
    %2336 = vdwg.mxu0
    %v2337 = vadd.f32 %v2334, %v102
    %v2338 = vtanh.pop %v2337
    %v2339 = vmul.f32 %v2338, %v85
    %v2340 = vadd.f32 %v2339, %v86
    %v2341 = vmul.f32 %v2340, %v2080
    %2343 = vrot.lane.b32.xlu0 %v2340, 64
    %v2344 = vpop.permute.xlu0 %2343
    %v2346 = vmul.f32 %v2340, %v2344
    %2348 = vrot.lane.b32.xlu0 %v2346, 32
    %v2349 = vpop.permute.xlu0 %2348
    %v2351 = vadd.f32 %v2341, %v2349
    %v2352 = vtanh.pop %v2351
    %2354 = vrot.lane.b32.xlu0 %v2352, 64
    %v2355 = vpop.permute.xlu0 %2354
    %v2357 = vmul.f32 %v2340, %v2355
    %2359 = vrot.lane.b32.xlu0 %v2357, 32
    %v2360 = vpop.permute.xlu0 %2359
    %2362 = vst.msk [vmem:[#allocation2 + $0x7] sm:$0x1] %vm464, %v2360
    %v2363 = vld [vmem:[#allocation2] sm:$0xff]
    %v2364 = vld [vmem:[%s9] sm:$0xff]
    %v2365 = vld [vmem:[%s9 + $0x8] sm:$0xff]
    %v2366 = vld [vmem:[%s9 + $0x10] sm:$0xff]
    %v2367 = vld [vmem:[%s9 + $0x18] sm:$0xff]
    %v2368 = vld [vmem:[%s10] sm:$0x1]
    %v2370 = vlaneseq
    %v2371 = vshrl.u32 %v2370, 7
    %v2372 = vsub.s32 0, %v2371
    %v2373 = vrot.slane %v2368, %v2372
    %v2376 = vsel %vm188, %v2363, 0
    %2378 = vmatprep.subr.mxu0 0.0
    %2379 = vmatpush1.msra.mxu0 0.0
    %2380 = vmatprep.subr.mxu0 0.0
    %2381 = vmatpush1.msra.mxu0 0.0
    %2382 = vmatprep.subr.mxu0 0.0
    %2383 = vmatpush1.msra.mxu0 0.0
    %2384 = vmatprep.subr.mxu0 0.0
    %2385 = vmatpush1.msra.mxu0 0.0
    %2386 = vmatprep.subr.mxu0 0.0
    %2387 = vmatpush1.msra.mxu0 0.0
    %2388 = vmatprep.subr.mxu0 0.0
    %2389 = vmatpush1.msra.mxu0 0.0
    %2390 = vmatprep.subr.mxu0 0.0
    %2391 = vmatpush1.msra.mxu0 0.0
    %2392 = vmatprep.subr.mxu0 0.0
    %2393 = vmatpush1.msra.mxu0 0.0
    %2394 = vmatprep.subr.mxu0 0.0
    %2395 = vmatpush1.msra.mxu0 0.0
    %2396 = vmatprep.subr.mxu0 0.0
    %2397 = vmatpush1.msra.mxu0 0.0
    %2398 = vmatprep.subr.mxu0 0.0
    %2399 = vmatpush1.msra.mxu0 0.0
    %2400 = vmatprep.subr.mxu0 0.0
    %2401 = vmatpush1.msra.mxu0 0.0
    %2402 = vmatprep.subr.mxu0 0.0
    %2403 = vmatpush1.msra.mxu0 %v2367
    %2404 = vmatprep.subr.mxu0 0.0
    %2405 = vmatpush1.msra.mxu0 %v2366
    %2406 = vmatprep.subr.mxu0 0.0
    %2407 = vmatpush1.msra.mxu0 %v2365
    %2408 = vmatprep.subr.mxu0 0.0
    %2409 = vmatpush1.msra.mxu0 %v2364
    %2410 = vmatprep.subr.mxu0 0.0
    %2411 = vmatpush2.msra.mxu0 0.0
    %2412 = vmatprep.subr.mxu0 0.0
    %2413 = vmatpush2.msra.mxu0 0.0
    %2414 = vmatprep.subr.mxu0 0.0
    %2415 = vmatpush2.msra.mxu0 0.0
    %2416 = vmatprep.subr.mxu0 0.0
    %2417 = vmatpush2.msra.mxu0 0.0
    %2418 = vmatprep.subr.mxu0 0.0
    %2419 = vmatpush2.msra.mxu0 0.0
    %2420 = vmatprep.subr.mxu0 0.0
    %2421 = vmatpush2.msra.mxu0 0.0
    %2422 = vmatprep.subr.mxu0 0.0
    %2423 = vmatpush2.msra.mxu0 0.0
    %2424 = vmatprep.subr.mxu0 0.0
    %2425 = vmatpush2.msra.mxu0 0.0
    %2426 = vmatprep.subr.mxu0 0.0
    %2427 = vmatpush2.msra.mxu0 0.0
    %2428 = vmatprep.subr.mxu0 0.0
    %2429 = vmatpush2.msra.mxu0 0.0
    %2430 = vmatprep.subr.mxu0 0.0
    %2431 = vmatpush2.msra.mxu0 0.0
    %2432 = vmatprep.subr.mxu0 0.0
    %2433 = vmatpush2.msra.mxu0 0.0
    %2434 = vmatprep.subr.mxu0 0.0
    %2435 = vmatpush2.msra.mxu0 0.0
    %2436 = vmatprep.subr.mxu0 0.0
    %2437 = vmatpush2.msra.mxu0 0.0
    %2438 = vmatprep.subr.mxu0 0.0
    %2439 = vmatpush2.msra.mxu0 0.0
    %2440 = vmatprep.subr.mxu0 0.0
    %2441 = vmatpush2.msra.mxu0 0.0
    %2442 = vmatprep.mubr.f32.mxu0 0.0
    %2443 = vmatmul.mubr.f32.gmra.mxu0 %v2376
    %v2444 = vpop.f32.mrf.mxu0
    %v2445 = vadd.f32 %v2373, %v2444
    %v2446 = vpop.f32.mrf.mxu0
    %2447 = vdwg.mxu0
    %vm2448 = vcmask 64512
    %2449 = vst.msk [vmem:[#allocation9] sm:$0xff] %vm2448, %v2445
    // Predicated region
    $region58: #{tpu_custom_call.1} parent=1 // pred_check
      _
    $region59: #{tpu_custom_call.1} parent=1 // pred_check_branch
      %2451 = sbr.rel (0) target = $region61
    $region60: #{tpu_custom_call.1} parent=1 // pred_region
      %s2453 = ssub.s32 128, 128
      %2454 = vsyncadd [#allocation5], %s2453
      %s2456 = sshll.u32 [#allocation9], 4
      %s2457 = int_to_ptr.vmem [resolvable:$true] %s2456
      %2459 = dma.vmem_to_hbm [thread:$0]  %s2457, 128, %s11, [#allocation5]
    $region61: #{tpu_custom_call.1} parent=1 // pred_fallthru
      _
    // Predicated region
    $region62: #{tpu_custom_call.1} parent=1 // pred_check
      _
    $region63: #{tpu_custom_call.1} parent=1 // pred_check_branch
      %2461 = sbr.rel (0) target = $region65
    $region64: #{tpu_custom_call.1} parent=1 // pred_region
      %2462 = dma.done [#allocation5], 128
    $region65: #{tpu_custom_call.1} parent=1 // pred_fallthru
      _
    %2463 = vsyncpa [#allocation4], 1
    %2464 = vsyncpa [#allocation7], 1
    %2465 = vsyncpa [#allocation5], 1

</llo_original>
